<compile_context>
chip_gen: v7x
topology: tpu7x:2x2x1
jax: 0.10.0
libtpu: 0.0.40
codegen_flags: <defaults>
</compile_context>

<pallas_src>
import functools

import jax
import jax.numpy as jnp
import numpy as np
from jax.experimental import pallas as pl
from jax.experimental.pallas import tpu as pltpu

LANE = 128  # TPU vreg lane width


def _round_up(n, m):
    return (n + m - 1) // m * m


# ----------------------------------------------------------------------------
# Glue (plain JAX): build the affine transformation from the layer parameters.
# ----------------------------------------------------------------------------
def _diag_embed(v, offset, dim):
    """torch.diag_embed equivalent for batched vectors v: (O, dim - |offset|)."""
    n = dim - abs(offset)
    idx = jnp.arange(n)
    rows = idx + max(-offset, 0)
    cols = idx + max(offset, 0)
    out = jnp.zeros((v.shape[0], dim, dim), v.dtype)
    return out.at[:, rows, cols].set(v)


def build_scales_and_rot(scales, rots):
    """A = diag(scales) + symmetric off-diagonal rotation terms -> (O, D, D)."""
    O, D = scales.shape
    A = _diag_embed(scales, 0, D)
    for i in range(D - 1):
        A = A + _diag_embed(rots[i], i + 1, D)
        A = A + _diag_embed(rots[i], -(i + 1), D)
    return A


def pack_params(scales, rots, centroids, b, o_pad):
    """Pack ta's first D rows as a lane-dense matmul operand + bias row.

    W[k, d*o_pad + o] = A[o, d, k]            -> (D, D*o_pad)
    c[0, d*o_pad + o] = centroids[o, d, 0]    -> (1, D*o_pad)  (folded "|1" column)
    b_pad[0, o]       = b[o], padded with 1s  -> (1, o_pad)
    Padded columns (o >= O) are zero, so they contribute nothing to the dot.
    """
    O, D = scales.shape
    A = build_scales_and_rot(scales, rots)                       # (O, D, D)
    W = jnp.transpose(A, (2, 1, 0))                              # (k, d, o)
    W = jnp.pad(W, ((0, 0), (0, 0), (0, o_pad - O)))             # (D, D, o_pad)
    W = W.reshape(D, D * o_pad).astype(jnp.float32)
    c = jnp.transpose(centroids[:, :, 0], (1, 0))                # (d, o)
    c = jnp.pad(c, ((0, 0), (0, o_pad - O)))
    c = c.reshape(1, D * o_pad).astype(jnp.float32)
    b_pad = jnp.pad(b.astype(jnp.float32).reshape(1, O),
                    ((0, 0), (0, o_pad - O)), constant_values=1.0)
    return W, c, b_pad


# ----------------------------------------------------------------------------
# Pallas kernel: matmul + lane-aligned sum-of-squares + bell membership.
# ----------------------------------------------------------------------------
def fuzzy_bell_kernel(x_ref, w_ref, c_ref, b_ref, out_ref, *,
                      size_in, size_out, o_pad):
    # (TB, D) @ (D, D*o_pad) on the MXU, plus the centroid bias row: this folds
    # ext_x's constant "1" column without ever materializing (B, D+1) in HBM.
    y = jnp.dot(x_ref[...], w_ref[...],
                preferred_element_type=jnp.float32) + c_ref[...]

    # Sum of squares over the D groups.  Each group owns a full 128-lane slab
    # (columns d*o_pad .. d*o_pad + o_pad), so every slice below is vreg
    # aligned: plain full-width VPU multiply-adds, no cross-lane extraction.
    tb = y.shape[0]
    sumsq = jnp.zeros((tb, o_pad), jnp.float32)
    for d in range(size_in):                      # static, tiny unroll (D terms)
        yd = y[:, d * o_pad:(d + 1) * o_pad]
        sumsq = sumsq + yd * yd

    # membership = 1 / (1 + sumsq**b) == sigmoid(-b * log(sumsq)); log and
    # logistic run on the EUP (its own VLIW slot) instead of a VALU divide.
    # sumsq == 0 -> membership 1 (assumes b > 0, as in the module's init of
    # ones); all-zero padded columns also land there and are sliced off below.
    t = b_ref[...] * jnp.log(sumsq)
    out = jnp.where(sumsq > 0.0, jax.nn.sigmoid(-t), jnp.ones_like(sumsq))
    out_ref[...] = out[:, :size_out]


def fuzzy_bell_forward(x, scales, rots, centroids, b, *, tile_b=256):
    B, D = x.shape
    O = scales.shape[0]
    o_pad = _round_up(O, LANE)

    W, c_row, b_row = pack_params(scales, rots, centroids, b, o_pad)

    # Batch tiling: shrink the tile for tiny batches, cdiv grid, zero-pad the
    # tail (padded rows compute harmless values and are sliced off).
    tile_b = max(8, min(tile_b, _round_up(B, 8)))
    grid = pl.cdiv(B, tile_b)
    b_padded = grid * tile_b
    x_in = x.astype(jnp.float32)
    if b_padded != B:
        x_in = jnp.pad(x_in, ((0, b_padded - B), (0, 0)))

    kernel = functools.partial(fuzzy_bell_kernel,
                               size_in=D, size_out=O, o_pad=o_pad)
    out = pl.pallas_call(
        kernel,
        out_shape=jax.ShapeDtypeStruct((b_padded, O), jnp.float32),
        grid=(grid,),
        in_specs=[
            pl.BlockSpec((tile_b, D), lambda i: (i, 0)),        # x tile
            pl.BlockSpec((D, D * o_pad), lambda i: (0, 0)),     # packed A (const)
            pl.BlockSpec((1, D * o_pad), lambda i: (0, 0)),     # centroid bias row
            pl.BlockSpec((1, o_pad), lambda i: (0, 0)),         # exponent b
        ],
        out_specs=pl.BlockSpec((tile_b, O), lambda i: (i, 0)),
        compiler_params=pltpu.CompilerParams(
            # Batch tiles are independent -> shard across v7x's 2 TensorCores.
            dimension_semantics=("parallel",)),
    )(x_in, W, c_row, b_row)
    return out[:B] if b_padded != B else out


# ----------------------------------------------------------------------------
# Pure-JAX reference (mirrors the torch forward exactly).
# ----------------------------------------------------------------------------
def reference(x, scales, rots, centroids, b):
    O, D = scales.shape
    A = build_scales_and_rot(scales, rots)                    # (O, D, D)
    ta = jnp.concatenate([A, centroids], axis=2)              # (O, D, D+1)
    xext = jnp.concatenate([x, jnp.ones((x.shape[0], 1), x.dtype)], 1)
    mul = jnp.einsum('odk,bk->odb', ta, xext)                 # (O, D, B)
    rx = jnp.sqrt(jnp.sum(mul * mul, axis=1))                 # (O, B)
    rx = jnp.power(rx.T, 2.0 * b)                             # (B, O)
    return 1.0 / (1.0 + rx)


if __name__ == "__main__":
    # B deliberately not a multiple of tile_b: exercises the cdiv/pad path and
    # still gives a 2-step parallel grid (both v7x TensorCores used).
    B, D, O = 300, 4, 16  # batch, size_in, size_out

    key = jax.random.PRNGKey(0)
    keys = jax.random.split(key, 2 + (D - 1))
    x = jax.random.normal(keys[0], (B, D), jnp.float32)

    # Deterministic parameters with the shapes FuzzyBellLayer.__init__ creates.
    initial_centers = jax.random.normal(keys[1], (O, D), jnp.float32)
    scales = jnp.ones((O, D), jnp.float32)
    b = 1.0 + 0.25 * jnp.arange(O, dtype=jnp.float32) / O     # b > 0
    rots = [0.1 * jax.random.normal(keys[2 + i], (O, D - i - 1), jnp.float32)
            for i in range(D - 1)]
    centroids = initial_centers.reshape(O, D, 1)

    out = fuzzy_bell_forward(x, scales, rots, centroids, b, tile_b=256)
    out = jax.block_until_ready(out)

    ref = reference(x, scales, rots, centroids, b)
    assert out.shape == (B, O) and out.dtype == jnp.float32
    np.testing.assert_allclose(np.asarray(out), np.asarray(ref),
                               rtol=1e-5, atol=1e-5)
    print("KERNEL_OK")
</pallas_src>

<mosaic_0001>
module attributes {stable_mosaic.version = 11 : i64} {
  func.func @fuzzy_bell_kernel(%arg0: i32, %arg1: memref<256x4xf32, #tpu.memory_space<vmem>>, %arg2: memref<4x512xf32, #tpu.memory_space<vmem>>, %arg3: memref<1x512xf32, #tpu.memory_space<vmem>>, %arg4: memref<1x128xf32, #tpu.memory_space<vmem>>, %arg5: memref<256x16xf32, #tpu.memory_space<vmem>>) attributes {dimension_semantics = [#tpu.dimension_semantics<parallel>], iteration_bounds = array<i64: 2>, scalar_prefetch = 0 : i64, scratch_operands = 0 : i64, tpu.core_type = #tpu.core_type<tc>, window_params = [{transform_indices = @transform_0, window_bounds = array<i64: 256, 4>}, {pipeline_mode = #tpu.pipeline_mode<synchronous>, transform_indices = @transform_1, window_bounds = array<i64: 4, 512>}, {pipeline_mode = #tpu.pipeline_mode<synchronous>, transform_indices = @transform_2, window_bounds = array<i64: 1, 512>}, {pipeline_mode = #tpu.pipeline_mode<synchronous>, transform_indices = @transform_3, window_bounds = array<i64: 1, 128>}, {transform_indices = @transform_4, window_bounds = array<i64: 256, 16>}]} {
    %c0 = arith.constant 0 : index
    %c0_0 = arith.constant 0 : index
    %0 = vector.load %arg1[%c0, %c0_0] : memref<256x4xf32, #tpu.memory_space<vmem>>, vector<256x4xf32>
    %c0_1 = arith.constant 0 : index
    %c0_2 = arith.constant 0 : index
    %1 = vector.load %arg2[%c0_1, %c0_2] : memref<4x512xf32, #tpu.memory_space<vmem>>, vector<4x512xf32>
    %cst = arith.constant dense<0.000000e+00> : vector<256x512xf32>
    %2 = tpu.matmul %0, %1, %cst {dimension_numbers = #tpu.dot_dimension_numbers<[1], [0], [0], [1], [0, 0, 1, 1], [], []>} : vector<256x4xf32>, vector<4x512xf32>, vector<256x512xf32> -> vector<256x512xf32>
    %c0_3 = arith.constant 0 : index
    %c0_4 = arith.constant 0 : index
    %3 = vector.load %arg3[%c0_3, %c0_4] : memref<1x512xf32, #tpu.memory_space<vmem>>, vector<1x512xf32>
    %4 = vector.broadcast %3 : vector<1x512xf32> to vector<256x512xf32>
    %5 = arith.addf %2, %4 : vector<256x512xf32>
    %cst_5 = arith.constant 0.000000e+00 : f32
    %6 = vector.broadcast %cst_5 : f32 to vector<256x128xf32>
    %7 = vector.extract_strided_slice %5 {offsets = [0, 0], sizes = [256, 128], strides = [1, 1]} : vector<256x512xf32> to vector<256x128xf32>
    %8 = arith.mulf %7, %7 : vector<256x128xf32>
    %9 = arith.addf %6, %8 : vector<256x128xf32>
    %10 = vector.extract_strided_slice %5 {offsets = [0, 128], sizes = [256, 128], strides = [1, 1]} : vector<256x512xf32> to vector<256x128xf32>
    %11 = arith.mulf %10, %10 : vector<256x128xf32>
    %12 = arith.addf %9, %11 : vector<256x128xf32>
    %13 = vector.extract_strided_slice %5 {offsets = [0, 256], sizes = [256, 128], strides = [1, 1]} : vector<256x512xf32> to vector<256x128xf32>
    %14 = arith.mulf %13, %13 : vector<256x128xf32>
    %15 = arith.addf %12, %14 : vector<256x128xf32>
    %16 = vector.extract_strided_slice %5 {offsets = [0, 384], sizes = [256, 128], strides = [1, 1]} : vector<256x512xf32> to vector<256x128xf32>
    %17 = arith.mulf %16, %16 : vector<256x128xf32>
    %18 = arith.addf %15, %17 : vector<256x128xf32>
    %c0_6 = arith.constant 0 : index
    %c0_7 = arith.constant 0 : index
    %19 = vector.load %arg4[%c0_6, %c0_7] : memref<1x128xf32, #tpu.memory_space<vmem>>, vector<1x128xf32>
    %20 = math.log %18 : vector<256x128xf32>
    %21 = vector.broadcast %19 : vector<1x128xf32> to vector<256x128xf32>
    %22 = arith.mulf %21, %20 : vector<256x128xf32>
    %cst_8 = arith.constant 0.000000e+00 : f32
    %23 = vector.broadcast %cst_8 : f32 to vector<256x128xf32>
    %24 = arith.cmpf ogt, %18, %23 : vector<256x128xf32>
    %cst_9 = arith.constant 0.000000e+00 : f32
    %25 = vector.broadcast %cst_9 : f32 to vector<256x128xf32>
    %26 = arith.subf %25, %22 : vector<256x128xf32>
    %27 = arith.negf %26 : vector<256x128xf32>
    %28 = math.exp %27 : vector<256x128xf32>
    %cst_10 = arith.constant 1.000000e+00 : f32
    %29 = vector.broadcast %cst_10 : f32 to vector<256x128xf32>
    %30 = arith.addf %29, %28 : vector<256x128xf32>
    %31 = arith.divf %29, %30 : vector<256x128xf32>
    %cst_11 = arith.constant 1.000000e+00 : f32
    %32 = vector.broadcast %cst_11 : f32 to vector<256x128xf32>
    %33 = arith.select %24, %31, %32 : vector<256x128xi1>, vector<256x128xf32>
    %34 = vector.extract_strided_slice %33 {offsets = [0, 0], sizes = [256, 16], strides = [1, 1]} : vector<256x128xf32> to vector<256x16xf32>
    %c0_12 = arith.constant 0 : index
    %c0_13 = arith.constant 0 : index
    %35 = vector.load %arg5[%c0_12, %c0_13] : memref<256x16xf32, #tpu.memory_space<vmem>>, vector<256x16xf32>
    tpu.vector_store %arg5[%c0_12, %c0_13], %34 {strides = array<i32>} : memref<256x16xf32, #tpu.memory_space<vmem>>, vector<256x16xf32>,
    return
  }
  func.func @transform_0(%arg0: i32) -> (i32, i32) {
    %c0_i32 = arith.constant 0 : i32
    %c0_i32_0 = arith.constant 0 : i32
    return %arg0, %c0_i32 : i32, i32
  }
  func.func @transform_1(%arg0: i32) -> (i32, i32) {
    %c0_i32 = arith.constant 0 : i32
    %c0_i32_0 = arith.constant 0 : i32
    %c0_i32_1 = arith.constant 0 : i32
    return %c0_i32, %c0_i32_0 : i32, i32
  }
  func.func @transform_2(%arg0: i32) -> (i32, i32) {
    %c0_i32 = arith.constant 0 : i32
    %c0_i32_0 = arith.constant 0 : i32
    %c0_i32_1 = arith.constant 0 : i32
    return %c0_i32, %c0_i32_0 : i32, i32
  }
  func.func @transform_3(%arg0: i32) -> (i32, i32) {
    %c0_i32 = arith.constant 0 : i32
    %c0_i32_0 = arith.constant 0 : i32
    %c0_i32_1 = arith.constant 0 : i32
    return %c0_i32, %c0_i32_0 : i32, i32
  }
  func.func @transform_4(%arg0: i32) -> (i32, i32) {
    %c0_i32 = arith.constant 0 : i32
    %c0_i32_0 = arith.constant 0 : i32
    return %arg0, %c0_i32 : i32, i32
  }
}

</mosaic_0001>

<llo_original>
// kernel: tpu_custom_call.1
$region0: #{tpu_custom_call.1}
  #allocation0 [shape = 'u32[]', space=smem, size = 0x4, offset = 0x4, fixed_abs, tag = 'smem constant byte address 0x4 - core index']
  #allocation1 [shape = 'u32[144,128]{1,0:T(1,128)}', space=vmem, size = 0x12000, scoped, tag = 'internal scratch']
  %s0 = inlined_call_operand.vmem [shape: f32[512,4], index: 0, kind: input, shape index: {}]
  %s1 = inlined_call_operand.vmem [shape: f32[4,512], index: 1, kind: input, shape index: {}]
  %s2 = inlined_call_operand.vmem [shape: f32[1,512], index: 2, kind: input, shape index: {}]
  %s3 = inlined_call_operand.vmem [shape: f32[1,128], index: 3, kind: input, shape index: {}]
  %s4 = inlined_call_operand.vmem [shape: f32[512,16], index: 4, kind: output, shape index: {}]
  %s5 = sld [smem:[#allocation0]]
  $region49: #{tpu_custom_call.1} parent=0
    _
  %s7 = ssub.s32 1, %s5
  %s8 = scalar_select 0, %s7, %s5
  loop: start=0, step=1, limit=4
  $region2: #{tpu_custom_call.1} parent=0 // loop_pre_header
    _
  $region3: #{tpu_custom_call.1} parent=0 // loop_header
    %s10 = sphi 0, %s14
    %p11 = scmp.ge.s32.totalorder %s10, 4
    %s20 = sphi 0, %s22
    %s23 = sphi 0, %s20
    %s24 = sphi 0, %s23
    %s40 = sphi 0, %s24
    %s44 = sphi 0, %s44
    %s46 = sphi 0, %s44
    %s47 = sphi 0, %s46
    %s61 = sphi 0, %s47
    %s65 = sphi 0, %s65
    %s67 = sphi 0, %s65
    %s68 = sphi 0, %s67
    %s82 = sphi 0, %s68
    %s86 = sphi 0, %s86
    %s88 = sphi 0, %s86
    %s89 = sphi 0, %s88
    %s103 = sphi 0, %s89
    %s109 = sphi 0, %s111
    %s112 = sphi 0, %s109
    %s113 = sphi 0, %s112
    %s129 = sphi 0, %s113
  $region4: #{tpu_custom_call.1} parent=0 // loop_header_branch
    %13 = sbr.rel (%p11) target = $region8
  $region5: #{tpu_custom_call.1} parent=0 // loop_body
    %s15 = ssub.s32 %s10, 1
    %s16 = ssub.s32 %s10, 2
    %s17 = sadd.s32 %s10, 1
    %s18 = ssub.s32 %s10, %s17
    %p19 = scmp.eq.s32.totalorder %s18, 0
    %s21 = sadd.s32 %s20, 1
    %s22 = scalar_select %p19, %s20, %s21
    %p25 = pneg %p19
    %p26 = scmp.eq.s32.totalorder %s10, 1
    %p27 = por %p25, %p26
    %p28 = scmp.ne.s32.totalorder %s20, %s23
    %p29 = scmp.eq.s32.totalorder %s10, 0
    %p30 = por %p28, %p29
    %p31 = scmp.ne.s32.totalorder %s20, %s23
    %p32 = scmp.eq.s32.totalorder %s15, 1
    %p33 = por %p31, %p32
    %p34 = scmp.ne.s32.totalorder %s23, %s24
    %p35 = scmp.eq.s32.totalorder %s15, 0
    %p36 = por %p34, %p35
    %p37 = scmp.ne.s32.totalorder %s23, %s24
    %p38 = scmp.eq.s32.totalorder %s16, 1
    %p39 = por %p37, %p38
    %p41 = scmp.ne.s32.totalorder %s24, %s40
    %p42 = scmp.eq.s32.totalorder %s16, 0
    %p43 = por %p41, %p42
    %s45 = sadd.s32 %s44, 1
    %p48 = scmp.eq.s32.totalorder %s10, 1
    %p49 = scmp.ne.s32.totalorder %s44, %s46
    %p50 = scmp.eq.s32.totalorder %s10, 0
    %p51 = por %p49, %p50
    %p52 = scmp.ne.s32.totalorder %s44, %s46
    %p53 = scmp.eq.s32.totalorder %s15, 1
    %p54 = por %p52, %p53
    %p55 = scmp.ne.s32.totalorder %s46, %s47
    %p56 = scmp.eq.s32.totalorder %s15, 0
    %p57 = por %p55, %p56
    %p58 = scmp.ne.s32.totalorder %s46, %s47
    %p59 = scmp.eq.s32.totalorder %s16, 1
    %p60 = por %p58, %p59
    %p62 = scmp.ne.s32.totalorder %s47, %s61
    %p63 = scmp.eq.s32.totalorder %s16, 0
    %p64 = por %p62, %p63
    %s66 = sadd.s32 %s65, 1
    %p69 = scmp.eq.s32.totalorder %s10, 1
    %p70 = scmp.ne.s32.totalorder %s65, %s67
    %p71 = scmp.eq.s32.totalorder %s10, 0
    %p72 = por %p70, %p71
    %p73 = scmp.ne.s32.totalorder %s65, %s67
    %p74 = scmp.eq.s32.totalorder %s15, 1
    %p75 = por %p73, %p74
    %p76 = scmp.ne.s32.totalorder %s67, %s68
    %p77 = scmp.eq.s32.totalorder %s15, 0
    %p78 = por %p76, %p77
    %p79 = scmp.ne.s32.totalorder %s67, %s68
    %p80 = scmp.eq.s32.totalorder %s16, 1
    %p81 = por %p79, %p80
    %p83 = scmp.ne.s32.totalorder %s68, %s82
    %p84 = scmp.eq.s32.totalorder %s16, 0
    %p85 = por %p83, %p84
    %s87 = sadd.s32 %s86, 1
    %p90 = scmp.eq.s32.totalorder %s10, 1
    %p91 = scmp.ne.s32.totalorder %s86, %s88
    %p92 = scmp.eq.s32.totalorder %s10, 0
    %p93 = por %p91, %p92
    %p94 = scmp.ne.s32.totalorder %s86, %s88
    %p95 = scmp.eq.s32.totalorder %s15, 1
    %p96 = por %p94, %p95
    %p97 = scmp.ne.s32.totalorder %s88, %s89
    %p98 = scmp.eq.s32.totalorder %s15, 0
    %p99 = por %p97, %p98
    %p100 = scmp.ne.s32.totalorder %s88, %s89
    %p101 = scmp.eq.s32.totalorder %s16, 1
    %p102 = por %p100, %p101
    %p104 = scmp.ne.s32.totalorder %s89, %s103
    %p105 = scmp.eq.s32.totalorder %s16, 0
    %p106 = por %p104, %p105
    %s107 = ssub.s32 %s10, %s17
    %p108 = scmp.eq.s32.totalorder %s107, 0
    %s110 = sadd.s32 %s109, 1
    %s111 = scalar_select %p108, %s109, %s110
    %p114 = pneg %p108
    %p115 = scmp.eq.s32.totalorder %s10, 1
    %p116 = por %p114, %p115
    %p117 = scmp.ne.s32.totalorder %s109, %s112
    %p118 = scmp.eq.s32.totalorder %s10, 0
    %p119 = por %p117, %p118
    %p120 = scmp.ne.s32.totalorder %s109, %s112
    %p121 = scmp.eq.s32.totalorder %s15, 1
    %p122 = por %p120, %p121
    %p123 = scmp.ne.s32.totalorder %s112, %s113
    %p124 = scmp.eq.s32.totalorder %s15, 0
    %p125 = por %p123, %p124
    %p126 = scmp.ne.s32.totalorder %s112, %s113
    %p127 = scmp.eq.s32.totalorder %s16, 1
    %p128 = por %p126, %p127
    %p130 = scmp.ne.s32.totalorder %s113, %s129
    %p131 = scmp.eq.s32.totalorder %s16, 0
    %p132 = por %p130, %p131
    %p133 = scmp.le.s32.totalorder 1, %s10
    %p134 = scmp.lt.s32.totalorder %s10, 3
    %p135 = pnand %p133, %p134
    %p136 = pneg %p135
    // Predicated region
    $region9: #{tpu_custom_call.1} parent=5 // pred_check
      _
    $region10: #{tpu_custom_call.1} parent=5 // pred_check_branch
      %138 = sbr.rel (%p135) target = $region12
    $region11: #{tpu_custom_call.1} parent=5 // pred_region
      %s139 = ssub.s32 %s10, 1
      // Predicated region
      $region13: #{tpu_custom_call.1} parent=11 // pred_check
        %p140 = pneg %p57
      $region14: #{tpu_custom_call.1} parent=11 // pred_check_branch
        %142 = sbr.rel (%p140) target = $region16
      $region15: #{tpu_custom_call.1} parent=11 // pred_region
        _
      $region16: #{tpu_custom_call.1} parent=11 // pred_fallthru
        _
      // Predicated region
      $region17: #{tpu_custom_call.1} parent=11 // pred_check
        %p143 = pneg %p78
      $region18: #{tpu_custom_call.1} parent=11 // pred_check_branch
        %145 = sbr.rel (%p143) target = $region20
      $region19: #{tpu_custom_call.1} parent=11 // pred_region
        _
      $region20: #{tpu_custom_call.1} parent=11 // pred_fallthru
        _
      // Predicated region
      $region21: #{tpu_custom_call.1} parent=11 // pred_check
        %p146 = pneg %p99
      $region22: #{tpu_custom_call.1} parent=11 // pred_check_branch
        %148 = sbr.rel (%p146) target = $region24
      $region23: #{tpu_custom_call.1} parent=11 // pred_region
        _
      $region24: #{tpu_custom_call.1} parent=11 // pred_fallthru
        _
    $region12: #{tpu_custom_call.1} parent=5 // pred_fallthru
      _
    %p149 = scmp.lt.s32.totalorder %s10, 2
    // Predicated region
    $region25: #{tpu_custom_call.1} parent=5 // pred_check
      %p150 = pneg %p149
    $region26: #{tpu_custom_call.1} parent=5 // pred_check_branch
      %152 = sbr.rel (%p150) target = $region28
    $region27: #{tpu_custom_call.1} parent=5 // pred_region
      // Predicated region
      $region29: #{tpu_custom_call.1} parent=27 // pred_check
        %p153 = pneg %p30
      $region30: #{tpu_custom_call.1} parent=27 // pred_check_branch
        %155 = sbr.rel (%p153) target = $region32
      $region31: #{tpu_custom_call.1} parent=27 // pred_region
        %s156 = smul.u32 32, %s10
        %p157 = scmp.lt.s32.totalorder %s156, 63
        %s158 = scalar_select %p157, %s156, 63
        %s159 = smul.addr %s158, 8
        %s160 = scalar_lea.vmem %s0, %s159
        %s161 = smul.u32 32, %s10
      $region32: #{tpu_custom_call.1} parent=27 // pred_fallthru
        _
    $region28: #{tpu_custom_call.1} parent=5 // pred_fallthru
      _
    %p162 = scmp.le.s32.totalorder 1, %s10
    %p163 = scmp.lt.s32.totalorder %s10, 3
    %p164 = pnand %p162, %p163
    %p165 = pneg %p164
    // Predicated region
    $region33: #{tpu_custom_call.1} parent=5 // pred_check
      _
    $region34: #{tpu_custom_call.1} parent=5 // pred_check_branch
      %167 = sbr.rel (%p164) target = $region36
    $region35: #{tpu_custom_call.1} parent=5 // pred_region
      %s168 = ssub.s32 %s10, 1
      %s169 = smul.u32 32, %s15
      %p170 = scmp.lt.s32.totalorder %s169, 63
      %s171 = scalar_select %p170, %s169, 63
      %s172 = smul.addr %s171, 8
      %s173 = scalar_lea.vmem %s0, %s172
      %p174 = pneg %p36
      %p175 = pneg %p33
      %p176 = pneg %p57
      %p177 = pneg %p54
      %p178 = pneg %p78
      %p179 = pneg %p75
      %p180 = pneg %p99
      %p181 = pneg %p96
      %p182 = pneg %p125
      %p183 = pneg %p122
      %s184 = smul.u32 32, %s15
      %p185 = scmp.lt.s32.totalorder %s184, 63
      %s186 = scalar_select %p185, %s184, 63
      %s187 = smul.addr %s186, 8
      %s188 = scalar_lea.vmem %s4, %s187
      %s189 = smul.u32 32, %s15
      %p190 = scmp.lt.s32.totalorder %s189, 63
      %s191 = scalar_select %p190, %s189, 63
      %s192 = smul.addr %s191, 8
      %s193 = scalar_lea.vmem %s0, %s192
      %s194 = smul.u32 32, %s15
      %s195 = smul.u32 32, %s15
      %p196 = scmp.lt.s32.totalorder %s195, 63
      %s197 = scalar_select %p196, %s195, 63
      %s198 = smul.addr %s197, 8
      %s199 = scalar_lea.vmem %s4, %s198
      %s200 = smul.u32 32, %s15
      %v201 = vld [vmem:[%s193] sm:$0xff]
      %v202 = vld [vmem:[%s193 + $0x8] sm:$0xff]
      %v203 = vld [vmem:[%s193 + $0x10] sm:$0xff]
      %v204 = vld [vmem:[%s193 + $0x18] sm:$0xff]
      %v205 = vld [vmem:[%s193 + $0x20] sm:$0xff]
      %v206 = vld [vmem:[%s193 + $0x28] sm:$0xff]
      %v207 = vld [vmem:[%s193 + $0x30] sm:$0xff]
      %v208 = vld [vmem:[%s193 + $0x38] sm:$0xff]
      %v209 = vld [vmem:[%s193 + $0x40] sm:$0xff]
      %v210 = vld [vmem:[%s193 + $0x48] sm:$0xff]
      %v211 = vld [vmem:[%s193 + $0x50] sm:$0xff]
      %v212 = vld [vmem:[%s193 + $0x58] sm:$0xff]
      %v213 = vld [vmem:[%s193 + $0x60] sm:$0xff]
      %v214 = vld [vmem:[%s193 + $0x68] sm:$0xff]
      %v215 = vld [vmem:[%s193 + $0x70] sm:$0xff]
      %v216 = vld [vmem:[%s193 + $0x78] sm:$0xff]
      %v217 = vld [vmem:[%s193 + $0x80] sm:$0xff]
      %v218 = vld [vmem:[%s193 + $0x88] sm:$0xff]
      %v219 = vld [vmem:[%s193 + $0x90] sm:$0xff]
      %v220 = vld [vmem:[%s193 + $0x98] sm:$0xff]
      %v221 = vld [vmem:[%s193 + $0xa0] sm:$0xff]
      %v222 = vld [vmem:[%s193 + $0xa8] sm:$0xff]
      %v223 = vld [vmem:[%s193 + $0xb0] sm:$0xff]
      %v224 = vld [vmem:[%s193 + $0xb8] sm:$0xff]
      %v225 = vld [vmem:[%s193 + $0xc0] sm:$0xff]
      %v226 = vld [vmem:[%s193 + $0xc8] sm:$0xff]
      %v227 = vld [vmem:[%s193 + $0xd0] sm:$0xff]
      %v228 = vld [vmem:[%s193 + $0xd8] sm:$0xff]
      %v229 = vld [vmem:[%s193 + $0xe0] sm:$0xff]
      %v230 = vld [vmem:[%s193 + $0xe8] sm:$0xff]
      %v231 = vld [vmem:[%s193 + $0xf0] sm:$0xff]
      %v232 = vld [vmem:[%s193 + $0xf8] sm:$0xff]
      %v233 = vld [vmem:[%s1] sm:$0xff]
      %v234 = vld [vmem:[%s1 + $0x8] sm:$0xff]
      %v235 = vld [vmem:[%s2] sm:$0xf]
      %v237 = vlaneseq
      %v238 = vshrl.u32 %v237, 7
      %v239 = vsub.s32 0, %v238
      %v240 = vrot.slane %v235, %v239
      %v241 = vlaneseq
      %v242 = vshrl.u32 %v241, 7
      %v243 = vsub.s32 1, %v242
      %v244 = vrot.slane %v235, %v243
      %v245 = vlaneseq
      %v246 = vshrl.u32 %v245, 7
      %v247 = vsub.s32 2, %v246
      %v248 = vrot.slane %v235, %v247
      %v249 = vlaneseq
      %v250 = vshrl.u32 %v249, 7
      %v251 = vsub.s32 3, %v250
      %v252 = vrot.slane %v235, %v251
      %v259 = vcombine.high %v233, %v233
      %v260 = vcombine.high %v234, %v234
      %vm261 = vcmask 31744
      %v263 = vsel %vm261, %v201, 0
      %v266 = vsel %vm261, %v202, 0
      %v269 = vsel %vm261, %v203, 0
      %v272 = vsel %vm261, %v204, 0
      %v275 = vsel %vm261, %v205, 0
      %v278 = vsel %vm261, %v206, 0
      %v281 = vsel %vm261, %v207, 0
      %v284 = vsel %vm261, %v208, 0
      %v287 = vsel %vm261, %v209, 0
      %v290 = vsel %vm261, %v210, 0
      %v293 = vsel %vm261, %v211, 0
      %v296 = vsel %vm261, %v212, 0
      %v299 = vsel %vm261, %v213, 0
      %v302 = vsel %vm261, %v214, 0
      %v305 = vsel %vm261, %v215, 0
      %v308 = vsel %vm261, %v216, 0
      %v311 = vsel %vm261, %v217, 0
      %v314 = vsel %vm261, %v218, 0
      %v317 = vsel %vm261, %v219, 0
      %v320 = vsel %vm261, %v220, 0
      %v323 = vsel %vm261, %v221, 0
      %v326 = vsel %vm261, %v222, 0
      %v329 = vsel %vm261, %v223, 0
      %v332 = vsel %vm261, %v224, 0
      %v335 = vsel %vm261, %v225, 0
      %v338 = vsel %vm261, %v226, 0
      %v341 = vsel %vm261, %v227, 0
      %v344 = vsel %vm261, %v228, 0
      %v347 = vsel %vm261, %v229, 0
      %v350 = vsel %vm261, %v230, 0
      %v353 = vsel %vm261, %v231, 0
      %v356 = vsel %vm261, %v232, 0
      %vm358 = vcmask 1043456
      %v359 = vsel %vm358, %v233, 0
      %v361 = vsel %vm358, %v259, 0
      %v363 = vsel %vm358, %v234, 0
      %v365 = vsel %vm358, %v260, 0
      %367 = vmatprep.subr.mxu0 %v361
      %368 = vmatpush1.msra.mxu0 %v359
      %369 = vmatprep.subr.mxu0 0.0
      %370 = vmatpush1.msra.mxu0 0.0
      %371 = vmatprep.subr.mxu0 0.0
      %372 = vmatpush1.msra.mxu0 0.0
      %373 = vmatprep.subr.mxu0 0.0
      %374 = vmatpush1.msra.mxu0 0.0
      %375 = vmatprep.subr.mxu0 0.0
      %376 = vmatpush1.msra.mxu0 0.0
      %377 = vmatprep.subr.mxu0 0.0
      %378 = vmatpush1.msra.mxu0 0.0
      %379 = vmatprep.subr.mxu0 0.0
      %380 = vmatpush1.msra.mxu0 0.0
      %381 = vmatprep.subr.mxu0 0.0
      %382 = vmatpush1.msra.mxu0 0.0
      %383 = vmatprep.subr.mxu0 0.0
      %384 = vmatpush1.msra.mxu0 0.0
      %385 = vmatprep.subr.mxu0 0.0
      %386 = vmatpush1.msra.mxu0 0.0
      %387 = vmatprep.subr.mxu0 0.0
      %388 = vmatpush1.msra.mxu0 0.0
      %389 = vmatprep.subr.mxu0 0.0
      %390 = vmatpush1.msra.mxu0 0.0
      %391 = vmatprep.subr.mxu0 0.0
      %392 = vmatpush1.msra.mxu0 0.0
      %393 = vmatprep.subr.mxu0 0.0
      %394 = vmatpush1.msra.mxu0 0.0
      %395 = vmatprep.subr.mxu0 0.0
      %396 = vmatpush1.msra.mxu0 0.0
      %397 = vmatprep.subr.mxu0 0.0
      %398 = vmatpush1.msra.mxu0 0.0
      %399 = vmatprep.subr.mxu0 0.0
      %400 = vmatpush1.msra.mxu0 0.0
      %401 = vmatprep.subr.mxu0 0.0
      %402 = vmatpush1.msra.mxu0 0.0
      %403 = vmatprep.subr.mxu0 0.0
      %404 = vmatpush1.msra.mxu0 0.0
      %405 = vmatprep.subr.mxu0 0.0
      %406 = vmatpush1.msra.mxu0 0.0
      %407 = vmatprep.subr.mxu0 0.0
      %408 = vmatpush1.msra.mxu0 0.0
      %409 = vmatprep.subr.mxu0 0.0
      %410 = vmatpush1.msra.mxu0 0.0
      %411 = vmatprep.subr.mxu0 0.0
      %412 = vmatpush1.msra.mxu0 0.0
      %413 = vmatprep.subr.mxu0 0.0
      %414 = vmatpush1.msra.mxu0 0.0
      %415 = vmatprep.subr.mxu0 0.0
      %416 = vmatpush1.msra.mxu0 0.0
      %417 = vmatprep.subr.mxu0 0.0
      %418 = vmatpush1.msra.mxu0 0.0
      %419 = vmatprep.subr.mxu0 0.0
      %420 = vmatpush1.msra.mxu0 0.0
      %421 = vmatprep.subr.mxu0 0.0
      %422 = vmatpush1.msra.mxu0 0.0
      %423 = vmatprep.subr.mxu0 0.0
      %424 = vmatpush1.msra.mxu0 0.0
      %425 = vmatprep.subr.mxu0 0.0
      %426 = vmatpush1.msra.mxu0 0.0
      %427 = vmatprep.subr.mxu0 0.0
      %428 = vmatpush1.msra.mxu0 0.0
      %429 = vmatprep.subr.mxu0 0.0
      %430 = vmatpush1.msra.mxu0 0.0
      %431 = vmatprep.mubr.f32.mxu0 0.0
      %432 = vmatmul.mubr.f32.gmra.mrb[0].mxu0 %v263
      %v433 = vpop.f32.mrb[0].mxu0
      %v434 = vadd.f32 %v240, %v433
      %v435 = vpop.f32.mrb[0].mxu0
      %v436 = vadd.f32 %v244, %v435
      %437 = vmatprep.mubr.f32.mxu0 0.0
      %438 = vmatmul.mubr.f32.gmra.mrb[0].mxu0 %v266
      %v439 = vpop.f32.mrb[0].mxu0
      %v440 = vadd.f32 %v240, %v439
      %v441 = vpop.f32.mrb[0].mxu0
      %v442 = vadd.f32 %v244, %v441
      %443 = vmatprep.mubr.f32.mxu0 0.0
      %444 = vmatmul.mubr.f32.gmra.mrb[0].mxu0 %v269
      %v445 = vpop.f32.mrb[0].mxu0
      %v446 = vadd.f32 %v240, %v445
      %v447 = vpop.f32.mrb[0].mxu0
      %v448 = vadd.f32 %v244, %v447
      %449 = vmatprep.mubr.f32.mxu0 0.0
      %450 = vmatmul.mubr.f32.gmra.mrb[0].mxu0 %v272
      %v451 = vpop.f32.mrb[0].mxu0
      %v452 = vadd.f32 %v240, %v451
      %v453 = vpop.f32.mrb[0].mxu0
      %v454 = vadd.f32 %v244, %v453
      %455 = vmatprep.mubr.f32.mxu0 0.0
      %456 = vmatmul.mubr.f32.gmra.mrb[0].mxu0 %v275
      %v457 = vpop.f32.mrb[0].mxu0
      %v458 = vadd.f32 %v240, %v457
      %v459 = vpop.f32.mrb[0].mxu0
      %v460 = vadd.f32 %v244, %v459
      %461 = vmatprep.mubr.f32.mxu0 0.0
      %462 = vmatmul.mubr.f32.gmra.mrb[0].mxu0 %v278
      %v463 = vpop.f32.mrb[0].mxu0
      %v464 = vadd.f32 %v240, %v463
      %v465 = vpop.f32.mrb[0].mxu0
      %v466 = vadd.f32 %v244, %v465
      %467 = vmatprep.mubr.f32.mxu0 0.0
      %468 = vmatmul.mubr.f32.gmra.mrb[0].mxu0 %v281
      %v469 = vpop.f32.mrb[0].mxu0
      %v470 = vadd.f32 %v240, %v469
      %v471 = vpop.f32.mrb[0].mxu0
      %v472 = vadd.f32 %v244, %v471
      %473 = vmatprep.mubr.f32.mxu0 0.0
      %474 = vmatmul.mubr.f32.gmra.mrb[0].mxu0 %v284
      %v475 = vpop.f32.mrb[0].mxu0
      %v476 = vadd.f32 %v240, %v475
      %v477 = vpop.f32.mrb[0].mxu0
      %v478 = vadd.f32 %v244, %v477
      %479 = vmatprep.mubr.f32.mxu0 0.0
      %480 = vmatmul.mubr.f32.gmra.mrb[0].mxu0 %v287
      %v481 = vpop.f32.mrb[0].mxu0
      %v482 = vadd.f32 %v240, %v481
      %v483 = vpop.f32.mrb[0].mxu0
      %v484 = vadd.f32 %v244, %v483
      %485 = vmatprep.mubr.f32.mxu0 0.0
      %486 = vmatmul.mubr.f32.gmra.mrb[0].mxu0 %v290
      %v487 = vpop.f32.mrb[0].mxu0
      %v488 = vadd.f32 %v240, %v487
      %v489 = vpop.f32.mrb[0].mxu0
      %v490 = vadd.f32 %v244, %v489
      %491 = vmatprep.mubr.f32.mxu0 0.0
      %492 = vmatmul.mubr.f32.gmra.mrb[0].mxu0 %v293
      %v493 = vpop.f32.mrb[0].mxu0
      %v494 = vadd.f32 %v240, %v493
      %v495 = vpop.f32.mrb[0].mxu0
      %v496 = vadd.f32 %v244, %v495
      %497 = vmatprep.mubr.f32.mxu0 0.0
      %498 = vmatmul.mubr.f32.gmra.mrb[0].mxu0 %v296
      %v499 = vpop.f32.mrb[0].mxu0
      %v500 = vadd.f32 %v240, %v499
      %v501 = vpop.f32.mrb[0].mxu0
      %v502 = vadd.f32 %v244, %v501
      %503 = vmatprep.mubr.f32.mxu0 0.0
      %504 = vmatmul.mubr.f32.gmra.mrb[0].mxu0 %v299
      %v505 = vpop.f32.mrb[0].mxu0
      %v506 = vadd.f32 %v240, %v505
      %v507 = vpop.f32.mrb[0].mxu0
      %v508 = vadd.f32 %v244, %v507
      %509 = vmatprep.mubr.f32.mxu0 0.0
      %510 = vmatmul.mubr.f32.gmra.mrb[0].mxu0 %v302
      %v511 = vpop.f32.mrb[0].mxu0
      %v512 = vadd.f32 %v240, %v511
      %v513 = vpop.f32.mrb[0].mxu0
      %v514 = vadd.f32 %v244, %v513
      %515 = vmatprep.mubr.f32.mxu0 0.0
      %516 = vmatmul.mubr.f32.gmra.mrb[0].mxu0 %v305
      %v517 = vpop.f32.mrb[0].mxu0
      %v518 = vadd.f32 %v240, %v517
      %v519 = vpop.f32.mrb[0].mxu0
      %v520 = vadd.f32 %v244, %v519
      %521 = vmatprep.mubr.f32.mxu0 0.0
      %522 = vmatmul.mubr.f32.gmra.mrb[0].mxu0 %v308
      %v523 = vpop.f32.mrb[0].mxu0
      %v524 = vadd.f32 %v240, %v523
      %v525 = vpop.f32.mrb[0].mxu0
      %v526 = vadd.f32 %v244, %v525
      %527 = vmatprep.mubr.f32.mxu0 0.0
      %528 = vmatmul.mubr.f32.gmra.mrb[0].mxu0 %v311
      %v529 = vpop.f32.mrb[0].mxu0
      %v530 = vadd.f32 %v240, %v529
      %v531 = vpop.f32.mrb[0].mxu0
      %v532 = vadd.f32 %v244, %v531
      %533 = vmatprep.mubr.f32.mxu0 0.0
      %534 = vmatmul.mubr.f32.gmra.mrb[0].mxu0 %v314
      %v535 = vpop.f32.mrb[0].mxu0
      %v536 = vadd.f32 %v240, %v535
      %v537 = vpop.f32.mrb[0].mxu0
      %v538 = vadd.f32 %v244, %v537
      %539 = vmatprep.mubr.f32.mxu0 0.0
      %540 = vmatmul.mubr.f32.gmra.mrb[0].mxu0 %v317
      %v541 = vpop.f32.mrb[0].mxu0
      %v542 = vadd.f32 %v240, %v541
      %v543 = vpop.f32.mrb[0].mxu0
      %v544 = vadd.f32 %v244, %v543
      %545 = vmatprep.mubr.f32.mxu0 0.0
      %546 = vmatmul.mubr.f32.gmra.mrb[0].mxu0 %v320
      %v547 = vpop.f32.mrb[0].mxu0
      %v548 = vadd.f32 %v240, %v547
      %v549 = vpop.f32.mrb[0].mxu0
      %v550 = vadd.f32 %v244, %v549
      %551 = vmatprep.mubr.f32.mxu0 0.0
      %552 = vmatmul.mubr.f32.gmra.mrb[0].mxu0 %v323
      %v553 = vpop.f32.mrb[0].mxu0
      %v554 = vadd.f32 %v240, %v553
      %v555 = vpop.f32.mrb[0].mxu0
      %v556 = vadd.f32 %v244, %v555
      %557 = vmatprep.mubr.f32.mxu0 0.0
      %558 = vmatmul.mubr.f32.gmra.mrb[0].mxu0 %v326
      %v559 = vpop.f32.mrb[0].mxu0
      %v560 = vadd.f32 %v240, %v559
      %v561 = vpop.f32.mrb[0].mxu0
      %v562 = vadd.f32 %v244, %v561
      %563 = vmatprep.mubr.f32.mxu0 0.0
      %564 = vmatmul.mubr.f32.gmra.mrb[0].mxu0 %v329
      %v565 = vpop.f32.mrb[0].mxu0
      %v566 = vadd.f32 %v240, %v565
      %v567 = vpop.f32.mrb[0].mxu0
      %v568 = vadd.f32 %v244, %v567
      %569 = vmatprep.mubr.f32.mxu0 0.0
      %570 = vmatmul.mubr.f32.gmra.mrb[0].mxu0 %v332
      %v571 = vpop.f32.mrb[0].mxu0
      %v572 = vadd.f32 %v240, %v571
      %v573 = vpop.f32.mrb[0].mxu0
      %v574 = vadd.f32 %v244, %v573
      %575 = vmatprep.mubr.f32.mxu0 0.0
      %576 = vmatmul.mubr.f32.gmra.mrb[0].mxu0 %v335
      %v577 = vpop.f32.mrb[0].mxu0
      %v578 = vadd.f32 %v240, %v577
      %v579 = vpop.f32.mrb[0].mxu0
      %v580 = vadd.f32 %v244, %v579
      %581 = vmatprep.mubr.f32.mxu0 0.0
      %582 = vmatmul.mubr.f32.gmra.mrb[0].mxu0 %v338
      %v583 = vpop.f32.mrb[0].mxu0
      %v584 = vadd.f32 %v240, %v583
      %v585 = vpop.f32.mrb[0].mxu0
      %v586 = vadd.f32 %v244, %v585
      %587 = vmatprep.mubr.f32.mxu0 0.0
      %588 = vmatmul.mubr.f32.gmra.mrb[0].mxu0 %v341
      %v589 = vpop.f32.mrb[0].mxu0
      %v590 = vadd.f32 %v240, %v589
      %v591 = vpop.f32.mrb[0].mxu0
      %v592 = vadd.f32 %v244, %v591
      %593 = vmatprep.mubr.f32.mxu0 0.0
      %594 = vmatmul.mubr.f32.gmra.mrb[0].mxu0 %v344
      %v595 = vpop.f32.mrb[0].mxu0
      %v596 = vadd.f32 %v240, %v595
      %v597 = vpop.f32.mrb[0].mxu0
      %v598 = vadd.f32 %v244, %v597
      %599 = vmatprep.mubr.f32.mxu0 0.0
      %600 = vmatmul.mubr.f32.gmra.mrb[0].mxu0 %v347
      %v601 = vpop.f32.mrb[0].mxu0
      %v602 = vadd.f32 %v240, %v601
      %v603 = vpop.f32.mrb[0].mxu0
      %v604 = vadd.f32 %v244, %v603
      %605 = vmatprep.mubr.f32.mxu0 0.0
      %606 = vmatmul.mubr.f32.gmra.mrb[0].mxu0 %v350
      %v607 = vpop.f32.mrb[0].mxu0
      %v608 = vadd.f32 %v240, %v607
      %v609 = vpop.f32.mrb[0].mxu0
      %v610 = vadd.f32 %v244, %v609
      %611 = vmatprep.mubr.f32.mxu0 0.0
      %612 = vmatmul.mubr.f32.gmra.mrb[0].mxu0 %v353
      %v613 = vpop.f32.mrb[0].mxu0
      %v614 = vadd.f32 %v240, %v613
      %v615 = vpop.f32.mrb[0].mxu0
      %v616 = vadd.f32 %v244, %v615
      %617 = vmatprep.mubr.f32.mxu0 0.0
      %618 = vmatmul.mubr.f32.gmra.mrb[0].mxu0 %v356
      %v619 = vpop.f32.mrb[0].mxu0
      %v620 = vadd.f32 %v240, %v619
      %v621 = vpop.f32.mrb[0].mxu0
      %v622 = vadd.f32 %v244, %v621
      %623 = vdwg.mxu0
      %624 = vmatprep.subr.mxu0 %v365
      %625 = vmatpush1.msra.mxu0 %v363
      %626 = vmatprep.subr.mxu0 0.0
      %627 = vmatpush1.msra.mxu0 0.0
      %628 = vmatprep.subr.mxu0 0.0
      %629 = vmatpush1.msra.mxu0 0.0
      %630 = vmatprep.subr.mxu0 0.0
      %631 = vmatpush1.msra.mxu0 0.0
      %632 = vmatprep.subr.mxu0 0.0
      %633 = vmatpush1.msra.mxu0 0.0
      %634 = vmatprep.subr.mxu0 0.0
      %635 = vmatpush1.msra.mxu0 0.0
      %636 = vmatprep.subr.mxu0 0.0
      %637 = vmatpush1.msra.mxu0 0.0
      %638 = vmatprep.subr.mxu0 0.0
      %639 = vmatpush1.msra.mxu0 0.0
      %640 = vmatprep.subr.mxu0 0.0
      %641 = vmatpush1.msra.mxu0 0.0
      %642 = vmatprep.subr.mxu0 0.0
      %643 = vmatpush1.msra.mxu0 0.0
      %644 = vmatprep.subr.mxu0 0.0
      %645 = vmatpush1.msra.mxu0 0.0
      %646 = vmatprep.subr.mxu0 0.0
      %647 = vmatpush1.msra.mxu0 0.0
      %648 = vmatprep.subr.mxu0 0.0
      %649 = vmatpush1.msra.mxu0 0.0
      %650 = vmatprep.subr.mxu0 0.0
      %651 = vmatpush1.msra.mxu0 0.0
      %652 = vmatprep.subr.mxu0 0.0
      %653 = vmatpush1.msra.mxu0 0.0
      %654 = vmatprep.subr.mxu0 0.0
      %655 = vmatpush1.msra.mxu0 0.0
      %656 = vmatprep.subr.mxu0 0.0
      %657 = vmatpush1.msra.mxu0 0.0
      %658 = vmatprep.subr.mxu0 0.0
      %659 = vmatpush1.msra.mxu0 0.0
      %660 = vmatprep.subr.mxu0 0.0
      %661 = vmatpush1.msra.mxu0 0.0
      %662 = vmatprep.subr.mxu0 0.0
      %663 = vmatpush1.msra.mxu0 0.0
      %664 = vmatprep.subr.mxu0 0.0
      %665 = vmatpush1.msra.mxu0 0.0
      %666 = vmatprep.subr.mxu0 0.0
      %667 = vmatpush1.msra.mxu0 0.0
      %668 = vmatprep.subr.mxu0 0.0
      %669 = vmatpush1.msra.mxu0 0.0
      %670 = vmatprep.subr.mxu0 0.0
      %671 = vmatpush1.msra.mxu0 0.0
      %672 = vmatprep.subr.mxu0 0.0
      %673 = vmatpush1.msra.mxu0 0.0
      %674 = vmatprep.subr.mxu0 0.0
      %675 = vmatpush1.msra.mxu0 0.0
      %676 = vmatprep.subr.mxu0 0.0
      %677 = vmatpush1.msra.mxu0 0.0
      %678 = vmatprep.subr.mxu0 0.0
      %679 = vmatpush1.msra.mxu0 0.0
      %680 = vmatprep.subr.mxu0 0.0
      %681 = vmatpush1.msra.mxu0 0.0
      %682 = vmatprep.subr.mxu0 0.0
      %683 = vmatpush1.msra.mxu0 0.0
      %684 = vmatprep.subr.mxu0 0.0
      %685 = vmatpush1.msra.mxu0 0.0
      %686 = vmatprep.subr.mxu0 0.0
      %687 = vmatpush1.msra.mxu0 0.0
      %688 = vmatprep.mubr.f32.mxu0 0.0
      %689 = vmatmul.mubr.f32.gmra.mrb[0].mxu0 %v263
      %v690 = vpop.f32.mrb[0].mxu0
      %v691 = vadd.f32 %v248, %v690
      %v692 = vpop.f32.mrb[0].mxu0
      %v693 = vadd.f32 %v252, %v692
      %694 = vmatprep.mubr.f32.mxu0 0.0
      %695 = vmatmul.mubr.f32.gmra.mrb[0].mxu0 %v266
      %v696 = vpop.f32.mrb[0].mxu0
      %v697 = vadd.f32 %v248, %v696
      %v698 = vpop.f32.mrb[0].mxu0
      %v699 = vadd.f32 %v252, %v698
      %700 = vmatprep.mubr.f32.mxu0 0.0
      %701 = vmatmul.mubr.f32.gmra.mrb[0].mxu0 %v269
      %v702 = vpop.f32.mrb[0].mxu0
      %v703 = vadd.f32 %v248, %v702
      %v704 = vpop.f32.mrb[0].mxu0
      %v705 = vadd.f32 %v252, %v704
      %706 = vmatprep.mubr.f32.mxu0 0.0
      %707 = vmatmul.mubr.f32.gmra.mrb[0].mxu0 %v272
      %v708 = vpop.f32.mrb[0].mxu0
      %v709 = vadd.f32 %v248, %v708
      %v710 = vpop.f32.mrb[0].mxu0
      %v711 = vadd.f32 %v252, %v710
      %712 = vmatprep.mubr.f32.mxu0 0.0
      %713 = vmatmul.mubr.f32.gmra.mrb[0].mxu0 %v275
      %v714 = vpop.f32.mrb[0].mxu0
      %v715 = vadd.f32 %v248, %v714
      %v716 = vpop.f32.mrb[0].mxu0
      %v717 = vadd.f32 %v252, %v716
      %718 = vmatprep.mubr.f32.mxu0 0.0
      %719 = vmatmul.mubr.f32.gmra.mrb[0].mxu0 %v278
      %v720 = vpop.f32.mrb[0].mxu0
      %v721 = vadd.f32 %v248, %v720
      %v722 = vpop.f32.mrb[0].mxu0
      %v723 = vadd.f32 %v252, %v722
      %724 = vmatprep.mubr.f32.mxu0 0.0
      %725 = vmatmul.mubr.f32.gmra.mrb[0].mxu0 %v281
      %v726 = vpop.f32.mrb[0].mxu0
      %v727 = vadd.f32 %v248, %v726
      %v728 = vpop.f32.mrb[0].mxu0
      %v729 = vadd.f32 %v252, %v728
      %730 = vmatprep.mubr.f32.mxu0 0.0
      %731 = vmatmul.mubr.f32.gmra.mrb[0].mxu0 %v284
      %v732 = vpop.f32.mrb[0].mxu0
      %v733 = vadd.f32 %v248, %v732
      %v734 = vpop.f32.mrb[0].mxu0
      %v735 = vadd.f32 %v252, %v734
      %736 = vmatprep.mubr.f32.mxu0 0.0
      %737 = vmatmul.mubr.f32.gmra.mrb[0].mxu0 %v287
      %v738 = vpop.f32.mrb[0].mxu0
      %v739 = vadd.f32 %v248, %v738
      %v740 = vpop.f32.mrb[0].mxu0
      %v741 = vadd.f32 %v252, %v740
      %742 = vmatprep.mubr.f32.mxu0 0.0
      %743 = vmatmul.mubr.f32.gmra.mrb[0].mxu0 %v290
      %v744 = vpop.f32.mrb[0].mxu0
      %v745 = vadd.f32 %v248, %v744
      %v746 = vpop.f32.mrb[0].mxu0
      %v747 = vadd.f32 %v252, %v746
      %748 = vmatprep.mubr.f32.mxu0 0.0
      %749 = vmatmul.mubr.f32.gmra.mrb[0].mxu0 %v293
      %v750 = vpop.f32.mrb[0].mxu0
      %v751 = vadd.f32 %v248, %v750
      %v752 = vpop.f32.mrb[0].mxu0
      %v753 = vadd.f32 %v252, %v752
      %754 = vmatprep.mubr.f32.mxu0 0.0
      %755 = vmatmul.mubr.f32.gmra.mrb[0].mxu0 %v296
      %v756 = vpop.f32.mrb[0].mxu0
      %v757 = vadd.f32 %v248, %v756
      %v758 = vpop.f32.mrb[0].mxu0
      %v759 = vadd.f32 %v252, %v758
      %760 = vmatprep.mubr.f32.mxu0 0.0
      %761 = vmatmul.mubr.f32.gmra.mrb[0].mxu0 %v299
      %v762 = vpop.f32.mrb[0].mxu0
      %v763 = vadd.f32 %v248, %v762
      %v764 = vpop.f32.mrb[0].mxu0
      %v765 = vadd.f32 %v252, %v764
      %766 = vmatprep.mubr.f32.mxu0 0.0
      %767 = vmatmul.mubr.f32.gmra.mrb[0].mxu0 %v302
      %v768 = vpop.f32.mrb[0].mxu0
      %v769 = vadd.f32 %v248, %v768
      %v770 = vpop.f32.mrb[0].mxu0
      %v771 = vadd.f32 %v252, %v770
      %772 = vmatprep.mubr.f32.mxu0 0.0
      %773 = vmatmul.mubr.f32.gmra.mrb[0].mxu0 %v305
      %v774 = vpop.f32.mrb[0].mxu0
      %v775 = vadd.f32 %v248, %v774
      %v776 = vpop.f32.mrb[0].mxu0
      %v777 = vadd.f32 %v252, %v776
      %778 = vmatprep.mubr.f32.mxu0 0.0
      %779 = vmatmul.mubr.f32.gmra.mrb[0].mxu0 %v308
      %v780 = vpop.f32.mrb[0].mxu0
      %v781 = vadd.f32 %v248, %v780
      %v782 = vpop.f32.mrb[0].mxu0
      %v783 = vadd.f32 %v252, %v782
      %784 = vmatprep.mubr.f32.mxu0 0.0
      %785 = vmatmul.mubr.f32.gmra.mrb[0].mxu0 %v311
      %v786 = vpop.f32.mrb[0].mxu0
      %v787 = vadd.f32 %v248, %v786
      %v788 = vpop.f32.mrb[0].mxu0
      %v789 = vadd.f32 %v252, %v788
      %790 = vmatprep.mubr.f32.mxu0 0.0
      %791 = vmatmul.mubr.f32.gmra.mrb[0].mxu0 %v314
      %v792 = vpop.f32.mrb[0].mxu0
      %v793 = vadd.f32 %v248, %v792
      %v794 = vpop.f32.mrb[0].mxu0
      %v795 = vadd.f32 %v252, %v794
      %796 = vmatprep.mubr.f32.mxu0 0.0
      %797 = vmatmul.mubr.f32.gmra.mrb[0].mxu0 %v317
      %v798 = vpop.f32.mrb[0].mxu0
      %v799 = vadd.f32 %v248, %v798
      %v800 = vpop.f32.mrb[0].mxu0
      %v801 = vadd.f32 %v252, %v800
      %802 = vmatprep.mubr.f32.mxu0 0.0
      %803 = vmatmul.mubr.f32.gmra.mrb[0].mxu0 %v320
      %v804 = vpop.f32.mrb[0].mxu0
      %v805 = vadd.f32 %v248, %v804
      %v806 = vpop.f32.mrb[0].mxu0
      %v807 = vadd.f32 %v252, %v806
      %808 = vmatprep.mubr.f32.mxu0 0.0
      %809 = vmatmul.mubr.f32.gmra.mrb[0].mxu0 %v323
      %v810 = vpop.f32.mrb[0].mxu0
      %v811 = vadd.f32 %v248, %v810
      %v812 = vpop.f32.mrb[0].mxu0
      %v813 = vadd.f32 %v252, %v812
      %814 = vmatprep.mubr.f32.mxu0 0.0
      %815 = vmatmul.mubr.f32.gmra.mrb[0].mxu0 %v326
      %v816 = vpop.f32.mrb[0].mxu0
      %v817 = vadd.f32 %v248, %v816
      %v818 = vpop.f32.mrb[0].mxu0
      %v819 = vadd.f32 %v252, %v818
      %820 = vmatprep.mubr.f32.mxu0 0.0
      %821 = vmatmul.mubr.f32.gmra.mrb[0].mxu0 %v329
      %v822 = vpop.f32.mrb[0].mxu0
      %v823 = vadd.f32 %v248, %v822
      %v824 = vpop.f32.mrb[0].mxu0
      %v825 = vadd.f32 %v252, %v824
      %826 = vmatprep.mubr.f32.mxu0 0.0
      %827 = vmatmul.mubr.f32.gmra.mrb[0].mxu0 %v332
      %v828 = vpop.f32.mrb[0].mxu0
      %v829 = vadd.f32 %v248, %v828
      %v830 = vpop.f32.mrb[0].mxu0
      %v831 = vadd.f32 %v252, %v830
      %832 = vmatprep.mubr.f32.mxu0 0.0
      %833 = vmatmul.mubr.f32.gmra.mrb[0].mxu0 %v335
      %v834 = vpop.f32.mrb[0].mxu0
      %v835 = vadd.f32 %v248, %v834
      %v836 = vpop.f32.mrb[0].mxu0
      %v837 = vadd.f32 %v252, %v836
      %838 = vmatprep.mubr.f32.mxu0 0.0
      %839 = vmatmul.mubr.f32.gmra.mrb[0].mxu0 %v338
      %v840 = vpop.f32.mrb[0].mxu0
      %v841 = vadd.f32 %v248, %v840
      %v842 = vpop.f32.mrb[0].mxu0
      %v843 = vadd.f32 %v252, %v842
      %844 = vmatprep.mubr.f32.mxu0 0.0
      %845 = vmatmul.mubr.f32.gmra.mrb[0].mxu0 %v341
      %v846 = vpop.f32.mrb[0].mxu0
      %v847 = vadd.f32 %v248, %v846
      %v848 = vpop.f32.mrb[0].mxu0
      %v849 = vadd.f32 %v252, %v848
      %850 = vmatprep.mubr.f32.mxu0 0.0
      %851 = vmatmul.mubr.f32.gmra.mrb[0].mxu0 %v344
      %v852 = vpop.f32.mrb[0].mxu0
      %v853 = vadd.f32 %v248, %v852
      %v854 = vpop.f32.mrb[0].mxu0
      %v855 = vadd.f32 %v252, %v854
      %856 = vmatprep.mubr.f32.mxu0 0.0
      %857 = vmatmul.mubr.f32.gmra.mrb[0].mxu0 %v347
      %v858 = vpop.f32.mrb[0].mxu0
      %v859 = vadd.f32 %v248, %v858
      %v860 = vpop.f32.mrb[0].mxu0
      %v861 = vadd.f32 %v252, %v860
      %862 = vmatprep.mubr.f32.mxu0 0.0
      %863 = vmatmul.mubr.f32.gmra.mrb[0].mxu0 %v350
      %v864 = vpop.f32.mrb[0].mxu0
      %v865 = vadd.f32 %v248, %v864
      %v866 = vpop.f32.mrb[0].mxu0
      %v867 = vadd.f32 %v252, %v866
      %868 = vmatprep.mubr.f32.mxu0 0.0
      %869 = vmatmul.mubr.f32.gmra.mrb[0].mxu0 %v353
      %v870 = vpop.f32.mrb[0].mxu0
      %v871 = vadd.f32 %v248, %v870
      %v872 = vpop.f32.mrb[0].mxu0
      %v873 = vadd.f32 %v252, %v872
      %874 = vmatprep.mubr.f32.mxu0 0.0
      %875 = vmatmul.mubr.f32.gmra.mrb[0].mxu0 %v356
      %v876 = vpop.f32.mrb[0].mxu0
      %v877 = vadd.f32 %v248, %v876
      %v878 = vpop.f32.mrb[0].mxu0
      %v879 = vadd.f32 %v252, %v878
      %880 = vdwg.mxu0
      %v881 = vmul.f32 %v434, %v434
      %v882 = vmul.f32 %v440, %v440
      %v883 = vmul.f32 %v446, %v446
      %v884 = vmul.f32 %v452, %v452
      %v885 = vmul.f32 %v458, %v458
      %v886 = vmul.f32 %v464, %v464
      %v887 = vmul.f32 %v470, %v470
      %v888 = vmul.f32 %v476, %v476
      %v889 = vmul.f32 %v482, %v482
      %v890 = vmul.f32 %v488, %v488
      %v891 = vmul.f32 %v494, %v494
      %v892 = vmul.f32 %v500, %v500
      %v893 = vmul.f32 %v506, %v506
      %v894 = vmul.f32 %v512, %v512
      %v895 = vmul.f32 %v518, %v518
      %v896 = vmul.f32 %v524, %v524
      %v897 = vmul.f32 %v530, %v530
      %v898 = vmul.f32 %v536, %v536
      %v899 = vmul.f32 %v542, %v542
      %v900 = vmul.f32 %v548, %v548
      %v901 = vmul.f32 %v554, %v554
      %v902 = vmul.f32 %v560, %v560
      %v903 = vmul.f32 %v566, %v566
      %v904 = vmul.f32 %v572, %v572
      %v905 = vmul.f32 %v578, %v578
      %v906 = vmul.f32 %v584, %v584
      %v907 = vmul.f32 %v590, %v590
      %v908 = vmul.f32 %v596, %v596
      %v909 = vmul.f32 %v602, %v602
      %v910 = vmul.f32 %v608, %v608
      %v911 = vmul.f32 %v614, %v614
      %v912 = vmul.f32 %v620, %v620
      %v913 = vadd.f32 %v881, 0.0
      %v914 = vadd.f32 %v882, 0.0
      %v915 = vadd.f32 %v883, 0.0
      %v916 = vadd.f32 %v884, 0.0
      %v917 = vadd.f32 %v885, 0.0
      %v918 = vadd.f32 %v886, 0.0
      %v919 = vadd.f32 %v887, 0.0
      %v920 = vadd.f32 %v888, 0.0
      %v921 = vadd.f32 %v889, 0.0
      %v922 = vadd.f32 %v890, 0.0
      %v923 = vadd.f32 %v891, 0.0
      %v924 = vadd.f32 %v892, 0.0
      %v925 = vadd.f32 %v893, 0.0
      %v926 = vadd.f32 %v894, 0.0
      %v927 = vadd.f32 %v895, 0.0
      %v928 = vadd.f32 %v896, 0.0
      %v929 = vadd.f32 %v897, 0.0
      %v930 = vadd.f32 %v898, 0.0
      %v931 = vadd.f32 %v899, 0.0
      %v932 = vadd.f32 %v900, 0.0
      %v933 = vadd.f32 %v901, 0.0
      %v934 = vadd.f32 %v902, 0.0
      %v935 = vadd.f32 %v903, 0.0
      %v936 = vadd.f32 %v904, 0.0
      %v937 = vadd.f32 %v905, 0.0
      %v938 = vadd.f32 %v906, 0.0
      %v939 = vadd.f32 %v907, 0.0
      %v940 = vadd.f32 %v908, 0.0
      %v941 = vadd.f32 %v909, 0.0
      %v942 = vadd.f32 %v910, 0.0
      %v943 = vadd.f32 %v911, 0.0
      %v944 = vadd.f32 %v912, 0.0
      %v945 = vmul.f32 %v436, %v436
      %v946 = vmul.f32 %v442, %v442
      %v947 = vmul.f32 %v448, %v448
      %v948 = vmul.f32 %v454, %v454
      %v949 = vmul.f32 %v460, %v460
      %v950 = vmul.f32 %v466, %v466
      %v951 = vmul.f32 %v472, %v472
      %v952 = vmul.f32 %v478, %v478
      %v953 = vmul.f32 %v484, %v484
      %v954 = vmul.f32 %v490, %v490
      %v955 = vmul.f32 %v496, %v496
      %v956 = vmul.f32 %v502, %v502
      %v957 = vmul.f32 %v508, %v508
      %v958 = vmul.f32 %v514, %v514
      %v959 = vmul.f32 %v520, %v520
      %v960 = vmul.f32 %v526, %v526
      %v961 = vmul.f32 %v532, %v532
      %v962 = vmul.f32 %v538, %v538
      %v963 = vmul.f32 %v544, %v544
      %v964 = vmul.f32 %v550, %v550
      %v965 = vmul.f32 %v556, %v556
      %v966 = vmul.f32 %v562, %v562
      %v967 = vmul.f32 %v568, %v568
      %v968 = vmul.f32 %v574, %v574
      %v969 = vmul.f32 %v580, %v580
      %v970 = vmul.f32 %v586, %v586
      %v971 = vmul.f32 %v592, %v592
      %v972 = vmul.f32 %v598, %v598
      %v973 = vmul.f32 %v604, %v604
      %v974 = vmul.f32 %v610, %v610
      %v975 = vmul.f32 %v616, %v616
      %v976 = vmul.f32 %v622, %v622
      %v977 = vadd.f32 %v913, %v945
      %v978 = vadd.f32 %v914, %v946
      %v979 = vadd.f32 %v915, %v947
      %v980 = vadd.f32 %v916, %v948
      %v981 = vadd.f32 %v917, %v949
      %v982 = vadd.f32 %v918, %v950
      %v983 = vadd.f32 %v919, %v951
      %v984 = vadd.f32 %v920, %v952
      %v985 = vadd.f32 %v921, %v953
      %v986 = vadd.f32 %v922, %v954
      %v987 = vadd.f32 %v923, %v955
      %v988 = vadd.f32 %v924, %v956
      %v989 = vadd.f32 %v925, %v957
      %v990 = vadd.f32 %v926, %v958
      %v991 = vadd.f32 %v927, %v959
      %v992 = vadd.f32 %v928, %v960
      %v993 = vadd.f32 %v929, %v961
      %v994 = vadd.f32 %v930, %v962
      %v995 = vadd.f32 %v931, %v963
      %v996 = vadd.f32 %v932, %v964
      %v997 = vadd.f32 %v933, %v965
      %v998 = vadd.f32 %v934, %v966
      %v999 = vadd.f32 %v935, %v967
      %v1000 = vadd.f32 %v936, %v968
      %v1001 = vadd.f32 %v937, %v969
      %v1002 = vadd.f32 %v938, %v970
      %v1003 = vadd.f32 %v939, %v971
      %v1004 = vadd.f32 %v940, %v972
      %v1005 = vadd.f32 %v941, %v973
      %v1006 = vadd.f32 %v942, %v974
      %v1007 = vadd.f32 %v943, %v975
      %v1008 = vadd.f32 %v944, %v976
      %v1009 = vmul.f32 %v691, %v691
      %v1010 = vmul.f32 %v697, %v697
      %v1011 = vmul.f32 %v703, %v703
      %v1012 = vmul.f32 %v709, %v709
      %v1013 = vmul.f32 %v715, %v715
      %v1014 = vmul.f32 %v721, %v721
      %v1015 = vmul.f32 %v727, %v727
      %v1016 = vmul.f32 %v733, %v733
      %v1017 = vmul.f32 %v739, %v739
      %v1018 = vmul.f32 %v745, %v745
      %v1019 = vmul.f32 %v751, %v751
      %v1020 = vmul.f32 %v757, %v757
      %v1021 = vmul.f32 %v763, %v763
      %v1022 = vmul.f32 %v769, %v769
      %v1023 = vmul.f32 %v775, %v775
      %v1024 = vmul.f32 %v781, %v781
      %v1025 = vmul.f32 %v787, %v787
      %v1026 = vmul.f32 %v793, %v793
      %v1027 = vmul.f32 %v799, %v799
      %v1028 = vmul.f32 %v805, %v805
      %v1029 = vmul.f32 %v811, %v811
      %v1030 = vmul.f32 %v817, %v817
      %v1031 = vmul.f32 %v823, %v823
      %v1032 = vmul.f32 %v829, %v829
      %v1033 = vmul.f32 %v835, %v835
      %v1034 = vmul.f32 %v841, %v841
      %v1035 = vmul.f32 %v847, %v847
      %v1036 = vmul.f32 %v853, %v853
      %v1037 = vmul.f32 %v859, %v859
      %v1038 = vmul.f32 %v865, %v865
      %v1039 = vmul.f32 %v871, %v871
      %v1040 = vmul.f32 %v877, %v877
      %v1041 = vadd.f32 %v977, %v1009
      %v1042 = vadd.f32 %v978, %v1010
      %v1043 = vadd.f32 %v979, %v1011
      %v1044 = vadd.f32 %v980, %v1012
      %v1045 = vadd.f32 %v981, %v1013
      %v1046 = vadd.f32 %v982, %v1014
      %v1047 = vadd.f32 %v983, %v1015
      %v1048 = vadd.f32 %v984, %v1016
      %v1049 = vadd.f32 %v985, %v1017
      %v1050 = vadd.f32 %v986, %v1018
      %v1051 = vadd.f32 %v987, %v1019
      %v1052 = vadd.f32 %v988, %v1020
      %v1053 = vadd.f32 %v989, %v1021
      %v1054 = vadd.f32 %v990, %v1022
      %v1055 = vadd.f32 %v991, %v1023
      %v1056 = vadd.f32 %v992, %v1024
      %v1057 = vadd.f32 %v993, %v1025
      %v1058 = vadd.f32 %v994, %v1026
      %v1059 = vadd.f32 %v995, %v1027
      %v1060 = vadd.f32 %v996, %v1028
      %v1061 = vadd.f32 %v997, %v1029
      %v1062 = vadd.f32 %v998, %v1030
      %v1063 = vadd.f32 %v999, %v1031
      %v1064 = vadd.f32 %v1000, %v1032
      %v1065 = vadd.f32 %v1001, %v1033
      %v1066 = vadd.f32 %v1002, %v1034
      %v1067 = vadd.f32 %v1003, %v1035
      %v1068 = vadd.f32 %v1004, %v1036
      %v1069 = vadd.f32 %v1005, %v1037
      %v1070 = vadd.f32 %v1006, %v1038
      %v1071 = vadd.f32 %v1007, %v1039
      %v1072 = vadd.f32 %v1008, %v1040
      %v1073 = vmul.f32 %v693, %v693
      %v1074 = vmul.f32 %v699, %v699
      %v1075 = vmul.f32 %v705, %v705
      %v1076 = vmul.f32 %v711, %v711
      %v1077 = vmul.f32 %v717, %v717
      %v1078 = vmul.f32 %v723, %v723
      %v1079 = vmul.f32 %v729, %v729
      %v1080 = vmul.f32 %v735, %v735
      %v1081 = vmul.f32 %v741, %v741
      %v1082 = vmul.f32 %v747, %v747
      %v1083 = vmul.f32 %v753, %v753
      %v1084 = vmul.f32 %v759, %v759
      %v1085 = vmul.f32 %v765, %v765
      %v1086 = vmul.f32 %v771, %v771
      %v1087 = vmul.f32 %v777, %v777
      %v1088 = vmul.f32 %v783, %v783
      %v1089 = vmul.f32 %v789, %v789
      %v1090 = vmul.f32 %v795, %v795
      %v1091 = vmul.f32 %v801, %v801
      %v1092 = vmul.f32 %v807, %v807
      %v1093 = vmul.f32 %v813, %v813
      %v1094 = vmul.f32 %v819, %v819
      %v1095 = vmul.f32 %v825, %v825
      %v1096 = vmul.f32 %v831, %v831
      %v1097 = vmul.f32 %v837, %v837
      %v1098 = vmul.f32 %v843, %v843
      %v1099 = vmul.f32 %v849, %v849
      %v1100 = vmul.f32 %v855, %v855
      %v1101 = vmul.f32 %v861, %v861
      %v1102 = vmul.f32 %v867, %v867
      %v1103 = vmul.f32 %v873, %v873
      %v1104 = vmul.f32 %v879, %v879
      %v1105 = vadd.f32 %v1041, %v1073
      %v1106 = vadd.f32 %v1042, %v1074
      %v1107 = vadd.f32 %v1043, %v1075
      %v1108 = vadd.f32 %v1044, %v1076
      %v1109 = vadd.f32 %v1045, %v1077
      %v1110 = vadd.f32 %v1046, %v1078
      %v1111 = vadd.f32 %v1047, %v1079
      %v1112 = vadd.f32 %v1048, %v1080
      %v1113 = vadd.f32 %v1049, %v1081
      %v1114 = vadd.f32 %v1050, %v1082
      %v1115 = vadd.f32 %v1051, %v1083
      %v1116 = vadd.f32 %v1052, %v1084
      %v1117 = vadd.f32 %v1053, %v1085
      %v1118 = vadd.f32 %v1054, %v1086
      %v1119 = vadd.f32 %v1055, %v1087
      %v1120 = vadd.f32 %v1056, %v1088
      %v1121 = vadd.f32 %v1057, %v1089
      %v1122 = vadd.f32 %v1058, %v1090
      %v1123 = vadd.f32 %v1059, %v1091
      %v1124 = vadd.f32 %v1060, %v1092
      %v1125 = vadd.f32 %v1061, %v1093
      %v1126 = vadd.f32 %v1062, %v1094
      %v1127 = vadd.f32 %v1063, %v1095
      %v1128 = vadd.f32 %v1064, %v1096
      %v1129 = vadd.f32 %v1065, %v1097
      %v1130 = vadd.f32 %v1066, %v1098
      %v1131 = vadd.f32 %v1067, %v1099
      %v1132 = vadd.f32 %v1068, %v1100
      %v1133 = vadd.f32 %v1069, %v1101
      %v1134 = vadd.f32 %v1070, %v1102
      %v1135 = vadd.f32 %v1071, %v1103
      %v1136 = vadd.f32 %v1072, %v1104
      %v1137 = vld [vmem:[%s3] sm:$0x1]
      %v1138 = vlog2.pop %v1105
      %v1139 = vmul.f32 %v1138, 0.6931472
      %v1140 = vlog2.pop %v1106
      %v1141 = vmul.f32 %v1140, 0.6931472
      %v1142 = vlog2.pop %v1107
      %v1143 = vmul.f32 %v1142, 0.6931472
      %v1144 = vlog2.pop %v1108
      %v1145 = vmul.f32 %v1144, 0.6931472
      %v1146 = vlog2.pop %v1109
      %v1147 = vmul.f32 %v1146, 0.6931472
      %v1148 = vlog2.pop %v1110
      %v1149 = vmul.f32 %v1148, 0.6931472
      %v1150 = vlog2.pop %v1111
      %v1151 = vmul.f32 %v1150, 0.6931472
      %v1152 = vlog2.pop %v1112
      %v1153 = vmul.f32 %v1152, 0.6931472
      %v1154 = vlog2.pop %v1113
      %v1155 = vmul.f32 %v1154, 0.6931472
      %v1156 = vlog2.pop %v1114
      %v1157 = vmul.f32 %v1156, 0.6931472
      %v1158 = vlog2.pop %v1115
      %v1159 = vmul.f32 %v1158, 0.6931472
      %v1160 = vlog2.pop %v1116
      %v1161 = vmul.f32 %v1160, 0.6931472
      %v1162 = vlog2.pop %v1117
      %v1163 = vmul.f32 %v1162, 0.6931472
      %v1164 = vlog2.pop %v1118
      %v1165 = vmul.f32 %v1164, 0.6931472
      %v1166 = vlog2.pop %v1119
      %v1167 = vmul.f32 %v1166, 0.6931472
      %v1168 = vlog2.pop %v1120
      %v1169 = vmul.f32 %v1168, 0.6931472
      %v1170 = vlog2.pop %v1121
      %v1171 = vmul.f32 %v1170, 0.6931472
      %v1172 = vlog2.pop %v1122
      %v1173 = vmul.f32 %v1172, 0.6931472
      %v1174 = vlog2.pop %v1123
      %v1175 = vmul.f32 %v1174, 0.6931472
      %v1176 = vlog2.pop %v1124
      %v1177 = vmul.f32 %v1176, 0.6931472
      %v1178 = vlog2.pop %v1125
      %v1179 = vmul.f32 %v1178, 0.6931472
      %v1180 = vlog2.pop %v1126
      %v1181 = vmul.f32 %v1180, 0.6931472
      %v1182 = vlog2.pop %v1127
      %v1183 = vmul.f32 %v1182, 0.6931472
      %v1184 = vlog2.pop %v1128
      %v1185 = vmul.f32 %v1184, 0.6931472
      %v1186 = vlog2.pop %v1129
      %v1187 = vmul.f32 %v1186, 0.6931472
      %v1188 = vlog2.pop %v1130
      %v1189 = vmul.f32 %v1188, 0.6931472
      %v1190 = vlog2.pop %v1131
      %v1191 = vmul.f32 %v1190, 0.6931472
      %v1192 = vlog2.pop %v1132
      %v1193 = vmul.f32 %v1192, 0.6931472
      %v1194 = vlog2.pop %v1133
      %v1195 = vmul.f32 %v1194, 0.6931472
      %v1196 = vlog2.pop %v1134
      %v1197 = vmul.f32 %v1196, 0.6931472
      %v1198 = vlog2.pop %v1135
      %v1199 = vmul.f32 %v1198, 0.6931472
      %v1200 = vlog2.pop %v1136
      %v1201 = vmul.f32 %v1200, 0.6931472
      %v1203 = vlaneseq
      %v1204 = vshrl.u32 %v1203, 7
      %v1205 = vsub.s32 0, %v1204
      %v1206 = vrot.slane %v1137, %v1205
      %v1208 = vmul.f32 %v1206, %v1139
      %v1209 = vmul.f32 %v1206, %v1141
      %v1210 = vmul.f32 %v1206, %v1143
      %v1211 = vmul.f32 %v1206, %v1145
      %v1212 = vmul.f32 %v1206, %v1147
      %v1213 = vmul.f32 %v1206, %v1149
      %v1214 = vmul.f32 %v1206, %v1151
      %v1215 = vmul.f32 %v1206, %v1153
      %v1216 = vmul.f32 %v1206, %v1155
      %v1217 = vmul.f32 %v1206, %v1157
      %v1218 = vmul.f32 %v1206, %v1159
      %v1219 = vmul.f32 %v1206, %v1161
      %v1220 = vmul.f32 %v1206, %v1163
      %v1221 = vmul.f32 %v1206, %v1165
      %v1222 = vmul.f32 %v1206, %v1167
      %v1223 = vmul.f32 %v1206, %v1169
      %v1224 = vmul.f32 %v1206, %v1171
      %v1225 = vmul.f32 %v1206, %v1173
      %v1226 = vmul.f32 %v1206, %v1175
      %v1227 = vmul.f32 %v1206, %v1177
      %v1228 = vmul.f32 %v1206, %v1179
      %v1229 = vmul.f32 %v1206, %v1181
      %v1230 = vmul.f32 %v1206, %v1183
      %v1231 = vmul.f32 %v1206, %v1185
      %v1232 = vmul.f32 %v1206, %v1187
      %v1233 = vmul.f32 %v1206, %v1189
      %v1234 = vmul.f32 %v1206, %v1191
      %v1235 = vmul.f32 %v1206, %v1193
      %v1236 = vmul.f32 %v1206, %v1195
      %v1237 = vmul.f32 %v1206, %v1197
      %v1238 = vmul.f32 %v1206, %v1199
      %v1239 = vmul.f32 %v1206, %v1201
      %vm1240 = vcmp.gt.f32.partialorder %v1105, 0.0
      %vm1241 = vcmp.gt.f32.partialorder %v1106, 0.0
      %vm1242 = vcmp.gt.f32.partialorder %v1107, 0.0
      %vm1243 = vcmp.gt.f32.partialorder %v1108, 0.0
      %vm1244 = vcmp.gt.f32.partialorder %v1109, 0.0
      %vm1245 = vcmp.gt.f32.partialorder %v1110, 0.0
      %vm1246 = vcmp.gt.f32.partialorder %v1111, 0.0
      %vm1247 = vcmp.gt.f32.partialorder %v1112, 0.0
      %vm1248 = vcmp.gt.f32.partialorder %v1113, 0.0
      %vm1249 = vcmp.gt.f32.partialorder %v1114, 0.0
      %vm1250 = vcmp.gt.f32.partialorder %v1115, 0.0
      %vm1251 = vcmp.gt.f32.partialorder %v1116, 0.0
      %vm1252 = vcmp.gt.f32.partialorder %v1117, 0.0
      %vm1253 = vcmp.gt.f32.partialorder %v1118, 0.0
      %vm1254 = vcmp.gt.f32.partialorder %v1119, 0.0
      %vm1255 = vcmp.gt.f32.partialorder %v1120, 0.0
      %vm1256 = vcmp.gt.f32.partialorder %v1121, 0.0
      %vm1257 = vcmp.gt.f32.partialorder %v1122, 0.0
      %vm1258 = vcmp.gt.f32.partialorder %v1123, 0.0
      %vm1259 = vcmp.gt.f32.partialorder %v1124, 0.0
      %vm1260 = vcmp.gt.f32.partialorder %v1125, 0.0
      %vm1261 = vcmp.gt.f32.partialorder %v1126, 0.0
      %vm1262 = vcmp.gt.f32.partialorder %v1127, 0.0
      %vm1263 = vcmp.gt.f32.partialorder %v1128, 0.0
      %vm1264 = vcmp.gt.f32.partialorder %v1129, 0.0
      %vm1265 = vcmp.gt.f32.partialorder %v1130, 0.0
      %vm1266 = vcmp.gt.f32.partialorder %v1131, 0.0
      %vm1267 = vcmp.gt.f32.partialorder %v1132, 0.0
      %vm1268 = vcmp.gt.f32.partialorder %v1133, 0.0
      %vm1269 = vcmp.gt.f32.partialorder %v1134, 0.0
      %vm1270 = vcmp.gt.f32.partialorder %v1135, 0.0
      %vm1271 = vcmp.gt.f32.partialorder %v1136, 0.0
      %v1272 = vsub.f32 0.0, %v1208
      %v1273 = vsub.f32 0.0, %v1209
      %v1274 = vsub.f32 0.0, %v1210
      %v1275 = vsub.f32 0.0, %v1211
      %v1276 = vsub.f32 0.0, %v1212
      %v1277 = vsub.f32 0.0, %v1213
      %v1278 = vsub.f32 0.0, %v1214
      %v1279 = vsub.f32 0.0, %v1215
      %v1280 = vsub.f32 0.0, %v1216
      %v1281 = vsub.f32 0.0, %v1217
      %v1282 = vsub.f32 0.0, %v1218
      %v1283 = vsub.f32 0.0, %v1219
      %v1284 = vsub.f32 0.0, %v1220
      %v1285 = vsub.f32 0.0, %v1221
      %v1286 = vsub.f32 0.0, %v1222
      %v1287 = vsub.f32 0.0, %v1223
      %v1288 = vsub.f32 0.0, %v1224
      %v1289 = vsub.f32 0.0, %v1225
      %v1290 = vsub.f32 0.0, %v1226
      %v1291 = vsub.f32 0.0, %v1227
      %v1292 = vsub.f32 0.0, %v1228
      %v1293 = vsub.f32 0.0, %v1229
      %v1294 = vsub.f32 0.0, %v1230
      %v1295 = vsub.f32 0.0, %v1231
      %v1296 = vsub.f32 0.0, %v1232
      %v1297 = vsub.f32 0.0, %v1233
      %v1298 = vsub.f32 0.0, %v1234
      %v1299 = vsub.f32 0.0, %v1235
      %v1300 = vsub.f32 0.0, %v1236
      %v1301 = vsub.f32 0.0, %v1237
      %v1302 = vsub.f32 0.0, %v1238
      %v1303 = vsub.f32 0.0, %v1239
      %v1304 = vxor.u32 %v1272, 2147483648
      %v1305 = vxor.u32 %v1273, 2147483648
      %v1306 = vxor.u32 %v1274, 2147483648
      %v1307 = vxor.u32 %v1275, 2147483648
      %v1308 = vxor.u32 %v1276, 2147483648
      %v1309 = vxor.u32 %v1277, 2147483648
      %v1310 = vxor.u32 %v1278, 2147483648
      %v1311 = vxor.u32 %v1279, 2147483648
      %v1312 = vxor.u32 %v1280, 2147483648
      %v1313 = vxor.u32 %v1281, 2147483648
      %v1314 = vxor.u32 %v1282, 2147483648
      %v1315 = vxor.u32 %v1283, 2147483648
      %v1316 = vxor.u32 %v1284, 2147483648
      %v1317 = vxor.u32 %v1285, 2147483648
      %v1318 = vxor.u32 %v1286, 2147483648
      %v1319 = vxor.u32 %v1287, 2147483648
      %v1320 = vxor.u32 %v1288, 2147483648
      %v1321 = vxor.u32 %v1289, 2147483648
      %v1322 = vxor.u32 %v1290, 2147483648
      %v1323 = vxor.u32 %v1291, 2147483648
      %v1324 = vxor.u32 %v1292, 2147483648
      %v1325 = vxor.u32 %v1293, 2147483648
      %v1326 = vxor.u32 %v1294, 2147483648
      %v1327 = vxor.u32 %v1295, 2147483648
      %v1328 = vxor.u32 %v1296, 2147483648
      %v1329 = vxor.u32 %v1297, 2147483648
      %v1330 = vxor.u32 %v1298, 2147483648
      %v1331 = vxor.u32 %v1299, 2147483648
      %v1332 = vxor.u32 %v1300, 2147483648
      %v1333 = vxor.u32 %v1301, 2147483648
      %v1334 = vxor.u32 %v1302, 2147483648
      %v1335 = vxor.u32 %v1303, 2147483648
      %v1336 = vmul.f32 %v1304, 1.442695
      %v1337 = vpow.pop %v1336
      %v1338 = vmul.f32 %v1305, 1.442695
      %v1339 = vpow.pop %v1338
      %v1340 = vmul.f32 %v1306, 1.442695
      %v1341 = vpow.pop %v1340
      %v1342 = vmul.f32 %v1307, 1.442695
      %v1343 = vpow.pop %v1342
      %v1344 = vmul.f32 %v1308, 1.442695
      %v1345 = vpow.pop %v1344
      %v1346 = vmul.f32 %v1309, 1.442695
      %v1347 = vpow.pop %v1346
      %v1348 = vmul.f32 %v1310, 1.442695
      %v1349 = vpow.pop %v1348
      %v1350 = vmul.f32 %v1311, 1.442695
      %v1351 = vpow.pop %v1350
      %v1352 = vmul.f32 %v1312, 1.442695
      %v1353 = vpow.pop %v1352
      %v1354 = vmul.f32 %v1313, 1.442695
      %v1355 = vpow.pop %v1354
      %v1356 = vmul.f32 %v1314, 1.442695
      %v1357 = vpow.pop %v1356
      %v1358 = vmul.f32 %v1315, 1.442695
      %v1359 = vpow.pop %v1358
      %v1360 = vmul.f32 %v1316, 1.442695
      %v1361 = vpow.pop %v1360
      %v1362 = vmul.f32 %v1317, 1.442695
      %v1363 = vpow.pop %v1362
      %v1364 = vmul.f32 %v1318, 1.442695
      %v1365 = vpow.pop %v1364
      %v1366 = vmul.f32 %v1319, 1.442695
      %v1367 = vpow.pop %v1366
      %v1368 = vmul.f32 %v1320, 1.442695
      %v1369 = vpow.pop %v1368
      %v1370 = vmul.f32 %v1321, 1.442695
      %v1371 = vpow.pop %v1370
      %v1372 = vmul.f32 %v1322, 1.442695
      %v1373 = vpow.pop %v1372
      %v1374 = vmul.f32 %v1323, 1.442695
      %v1375 = vpow.pop %v1374
      %v1376 = vmul.f32 %v1324, 1.442695
      %v1377 = vpow.pop %v1376
      %v1378 = vmul.f32 %v1325, 1.442695
      %v1379 = vpow.pop %v1378
      %v1380 = vmul.f32 %v1326, 1.442695
      %v1381 = vpow.pop %v1380
      %v1382 = vmul.f32 %v1327, 1.442695
      %v1383 = vpow.pop %v1382
      %v1384 = vmul.f32 %v1328, 1.442695
      %v1385 = vpow.pop %v1384
      %v1386 = vmul.f32 %v1329, 1.442695
      %v1387 = vpow.pop %v1386
      %v1388 = vmul.f32 %v1330, 1.442695
      %v1389 = vpow.pop %v1388
      %v1390 = vmul.f32 %v1331, 1.442695
      %v1391 = vpow.pop %v1390
      %v1392 = vmul.f32 %v1332, 1.442695
      %v1393 = vpow.pop %v1392
      %v1394 = vmul.f32 %v1333, 1.442695
      %v1395 = vpow.pop %v1394
      %v1396 = vmul.f32 %v1334, 1.442695
      %v1397 = vpow.pop %v1396
      %v1398 = vmul.f32 %v1335, 1.442695
      %v1399 = vpow.pop %v1398
      %v1400 = vadd.f32 %v1337, 1.0
      %v1401 = vadd.f32 %v1339, 1.0
      %v1402 = vadd.f32 %v1341, 1.0
      %v1403 = vadd.f32 %v1343, 1.0
      %v1404 = vadd.f32 %v1345, 1.0
      %v1405 = vadd.f32 %v1347, 1.0
      %v1406 = vadd.f32 %v1349, 1.0
      %v1407 = vadd.f32 %v1351, 1.0
      %v1408 = vadd.f32 %v1353, 1.0
      %v1409 = vadd.f32 %v1355, 1.0
      %v1410 = vadd.f32 %v1357, 1.0
      %v1411 = vadd.f32 %v1359, 1.0
      %v1412 = vadd.f32 %v1361, 1.0
      %v1413 = vadd.f32 %v1363, 1.0
      %v1414 = vadd.f32 %v1365, 1.0
      %v1415 = vadd.f32 %v1367, 1.0
      %v1416 = vadd.f32 %v1369, 1.0
      %v1417 = vadd.f32 %v1371, 1.0
      %v1418 = vadd.f32 %v1373, 1.0
      %v1419 = vadd.f32 %v1375, 1.0
      %v1420 = vadd.f32 %v1377, 1.0
      %v1421 = vadd.f32 %v1379, 1.0
      %v1422 = vadd.f32 %v1381, 1.0
      %v1423 = vadd.f32 %v1383, 1.0
      %v1424 = vadd.f32 %v1385, 1.0
      %v1425 = vadd.f32 %v1387, 1.0
      %v1426 = vadd.f32 %v1389, 1.0
      %v1427 = vadd.f32 %v1391, 1.0
      %v1428 = vadd.f32 %v1393, 1.0
      %v1429 = vadd.f32 %v1395, 1.0
      %v1430 = vadd.f32 %v1397, 1.0
      %v1431 = vadd.f32 %v1399, 1.0
      %v1432 = vrcp.pop %v1400
      %v1433 = vmul.f32 1.0, %v1432
      %v1434 = vrcp.pop %v1401
      %v1435 = vmul.f32 1.0, %v1434
      %v1436 = vrcp.pop %v1402
      %v1437 = vmul.f32 1.0, %v1436
      %v1438 = vrcp.pop %v1403
      %v1439 = vmul.f32 1.0, %v1438
      %v1440 = vrcp.pop %v1404
      %v1441 = vmul.f32 1.0, %v1440
      %v1442 = vrcp.pop %v1405
      %v1443 = vmul.f32 1.0, %v1442
      %v1444 = vrcp.pop %v1406
      %v1445 = vmul.f32 1.0, %v1444
      %v1446 = vrcp.pop %v1407
      %v1447 = vmul.f32 1.0, %v1446
      %v1448 = vrcp.pop %v1408
      %v1449 = vmul.f32 1.0, %v1448
      %v1450 = vrcp.pop %v1409
      %v1451 = vmul.f32 1.0, %v1450
      %v1452 = vrcp.pop %v1410
      %v1453 = vmul.f32 1.0, %v1452
      %v1454 = vrcp.pop %v1411
      %v1455 = vmul.f32 1.0, %v1454
      %v1456 = vrcp.pop %v1412
      %v1457 = vmul.f32 1.0, %v1456
      %v1458 = vrcp.pop %v1413
      %v1459 = vmul.f32 1.0, %v1458
      %v1460 = vrcp.pop %v1414
      %v1461 = vmul.f32 1.0, %v1460
      %v1462 = vrcp.pop %v1415
      %v1463 = vmul.f32 1.0, %v1462
      %v1464 = vrcp.pop %v1416
      %v1465 = vmul.f32 1.0, %v1464
      %v1466 = vrcp.pop %v1417
      %v1467 = vmul.f32 1.0, %v1466
      %v1468 = vrcp.pop %v1418
      %v1469 = vmul.f32 1.0, %v1468
      %v1470 = vrcp.pop %v1419
      %v1471 = vmul.f32 1.0, %v1470
      %v1472 = vrcp.pop %v1420
      %v1473 = vmul.f32 1.0, %v1472
      %v1474 = vrcp.pop %v1421
      %v1475 = vmul.f32 1.0, %v1474
      %v1476 = vrcp.pop %v1422
      %v1477 = vmul.f32 1.0, %v1476
      %v1478 = vrcp.pop %v1423
      %v1479 = vmul.f32 1.0, %v1478
      %v1480 = vrcp.pop %v1424
      %v1481 = vmul.f32 1.0, %v1480
      %v1482 = vrcp.pop %v1425
      %v1483 = vmul.f32 1.0, %v1482
      %v1484 = vrcp.pop %v1426
      %v1485 = vmul.f32 1.0, %v1484
      %v1486 = vrcp.pop %v1427
      %v1487 = vmul.f32 1.0, %v1486
      %v1488 = vrcp.pop %v1428
      %v1489 = vmul.f32 1.0, %v1488
      %v1490 = vrcp.pop %v1429
      %v1491 = vmul.f32 1.0, %v1490
      %v1492 = vrcp.pop %v1430
      %v1493 = vmul.f32 1.0, %v1492
      %v1494 = vrcp.pop %v1431
      %v1495 = vmul.f32 1.0, %v1494
      %v1496 = vsel %vm1240, %v1433, 1.0
      %v1497 = vsel %vm1241, %v1435, 1.0
      %v1498 = vsel %vm1242, %v1437, 1.0
      %v1499 = vsel %vm1243, %v1439, 1.0
      %v1500 = vsel %vm1244, %v1441, 1.0
      %v1501 = vsel %vm1245, %v1443, 1.0
      %v1502 = vsel %vm1246, %v1445, 1.0
      %v1503 = vsel %vm1247, %v1447, 1.0
      %v1504 = vsel %vm1248, %v1449, 1.0
      %v1505 = vsel %vm1249, %v1451, 1.0
      %v1506 = vsel %vm1250, %v1453, 1.0
      %v1507 = vsel %vm1251, %v1455, 1.0
      %v1508 = vsel %vm1252, %v1457, 1.0
      %v1509 = vsel %vm1253, %v1459, 1.0
      %v1510 = vsel %vm1254, %v1461, 1.0
      %v1511 = vsel %vm1255, %v1463, 1.0
      %v1512 = vsel %vm1256, %v1465, 1.0
      %v1513 = vsel %vm1257, %v1467, 1.0
      %v1514 = vsel %vm1258, %v1469, 1.0
      %v1515 = vsel %vm1259, %v1471, 1.0
      %v1516 = vsel %vm1260, %v1473, 1.0
      %v1517 = vsel %vm1261, %v1475, 1.0
      %v1518 = vsel %vm1262, %v1477, 1.0
      %v1519 = vsel %vm1263, %v1479, 1.0
      %v1520 = vsel %vm1264, %v1481, 1.0
      %v1521 = vsel %vm1265, %v1483, 1.0
      %v1522 = vsel %vm1266, %v1485, 1.0
      %v1523 = vsel %vm1267, %v1487, 1.0
      %v1524 = vsel %vm1268, %v1489, 1.0
      %v1525 = vsel %vm1269, %v1491, 1.0
      %v1526 = vsel %vm1270, %v1493, 1.0
      %v1527 = vsel %vm1271, %v1495, 1.0
      %vm1528 = vcmask 130048
      %1529 = vst.msk [vmem:[%s199] sm:$0xff] %vm1528, %v1496
      %1530 = vst.msk [vmem:[%s199 + $0x8] sm:$0xff] %vm1528, %v1497
      %1531 = vst.msk [vmem:[%s199 + $0x10] sm:$0xff] %vm1528, %v1498
      %1532 = vst.msk [vmem:[%s199 + $0x18] sm:$0xff] %vm1528, %v1499
      %1533 = vst.msk [vmem:[%s199 + $0x20] sm:$0xff] %vm1528, %v1500
      %1534 = vst.msk [vmem:[%s199 + $0x28] sm:$0xff] %vm1528, %v1501
      %1535 = vst.msk [vmem:[%s199 + $0x30] sm:$0xff] %vm1528, %v1502
      %1536 = vst.msk [vmem:[%s199 + $0x38] sm:$0xff] %vm1528, %v1503
      %1537 = vst.msk [vmem:[%s199 + $0x40] sm:$0xff] %vm1528, %v1504
      %1538 = vst.msk [vmem:[%s199 + $0x48] sm:$0xff] %vm1528, %v1505
      %1539 = vst.msk [vmem:[%s199 + $0x50] sm:$0xff] %vm1528, %v1506
      %1540 = vst.msk [vmem:[%s199 + $0x58] sm:$0xff] %vm1528, %v1507
      %1541 = vst.msk [vmem:[%s199 + $0x60] sm:$0xff] %vm1528, %v1508
      %1542 = vst.msk [vmem:[%s199 + $0x68] sm:$0xff] %vm1528, %v1509
      %1543 = vst.msk [vmem:[%s199 + $0x70] sm:$0xff] %vm1528, %v1510
      %1544 = vst.msk [vmem:[%s199 + $0x78] sm:$0xff] %vm1528, %v1511
      %1545 = vst.msk [vmem:[%s199 + $0x80] sm:$0xff] %vm1528, %v1512
      %1546 = vst.msk [vmem:[%s199 + $0x88] sm:$0xff] %vm1528, %v1513
      %1547 = vst.msk [vmem:[%s199 + $0x90] sm:$0xff] %vm1528, %v1514
      %1548 = vst.msk [vmem:[%s199 + $0x98] sm:$0xff] %vm1528, %v1515
      %1549 = vst.msk [vmem:[%s199 + $0xa0] sm:$0xff] %vm1528, %v1516
      %1550 = vst.msk [vmem:[%s199 + $0xa8] sm:$0xff] %vm1528, %v1517
      %1551 = vst.msk [vmem:[%s199 + $0xb0] sm:$0xff] %vm1528, %v1518
      %1552 = vst.msk [vmem:[%s199 + $0xb8] sm:$0xff] %vm1528, %v1519
      %1553 = vst.msk [vmem:[%s199 + $0xc0] sm:$0xff] %vm1528, %v1520
      %1554 = vst.msk [vmem:[%s199 + $0xc8] sm:$0xff] %vm1528, %v1521
      %1555 = vst.msk [vmem:[%s199 + $0xd0] sm:$0xff] %vm1528, %v1522
      %1556 = vst.msk [vmem:[%s199 + $0xd8] sm:$0xff] %vm1528, %v1523
      %1557 = vst.msk [vmem:[%s199 + $0xe0] sm:$0xff] %vm1528, %v1524
      %1558 = vst.msk [vmem:[%s199 + $0xe8] sm:$0xff] %vm1528, %v1525
      %1559 = vst.msk [vmem:[%s199 + $0xf0] sm:$0xff] %vm1528, %v1526
      %1560 = vst.msk [vmem:[%s199 + $0xf8] sm:$0xff] %vm1528, %v1527
      %s1561 = smul.u32 32, %s15
      %p1562 = scmp.lt.s32.totalorder %s1561, 63
      %s1563 = scalar_select %p1562, %s1561, 63
      %s1564 = smul.addr %s1563, 8
      %s1565 = scalar_lea.vmem %s4, %s1564
      // Predicated region
      $region37: #{tpu_custom_call.1} parent=35 // pred_check
        %p1566 = pneg %p122
      $region38: #{tpu_custom_call.1} parent=35 // pred_check_branch
        %1568 = sbr.rel (%p1566) target = $region40
      $region39: #{tpu_custom_call.1} parent=35 // pred_region
        %s1569 = smul.u32 32, %s15
      $region40: #{tpu_custom_call.1} parent=35 // pred_fallthru
        _
    $region36: #{tpu_custom_call.1} parent=5 // pred_fallthru
      _
    %p1570 = scmp.le.s32.totalorder 2, %s10
    // Predicated region
    $region41: #{tpu_custom_call.1} parent=5 // pred_check
      %p1571 = pneg %p1570
    $region42: #{tpu_custom_call.1} parent=5 // pred_check_branch
      %1573 = sbr.rel (%p1571) target = $region44
    $region43: #{tpu_custom_call.1} parent=5 // pred_region
      %s1574 = ssub.s32 %s10, 2
      // Predicated region
      $region45: #{tpu_custom_call.1} parent=43 // pred_check
        %p1575 = pneg %p128
      $region46: #{tpu_custom_call.1} parent=43 // pred_check_branch
        %1577 = sbr.rel (%p1575) target = $region48
      $region47: #{tpu_custom_call.1} parent=43 // pred_region
        %s1578 = smul.u32 32, %s16
        %p1579 = scmp.lt.s32.totalorder %s1578, 63
        %s1580 = scalar_select %p1579, %s1578, 63
        %s1581 = smul.addr %s1580, 8
        %s1582 = scalar_lea.vmem %s4, %s1581
      $region48: #{tpu_custom_call.1} parent=43 // pred_fallthru
        _
    $region44: #{tpu_custom_call.1} parent=5 // pred_fallthru
      _
  $region6: #{tpu_custom_call.1} parent=0 // loop_footer
    %s14 = sadd.s32 1, %s10
  $region7: #{tpu_custom_call.1} parent=0 // loop_footer_branch
    %9 = sbr.rel target = $region3
  $region8: #{tpu_custom_call.1} parent=0 // loop_exit
    _

</llo_original>
